<compile_context>
chip_gen: v5e
topology: v5e:2x2
jax: 0.10.0
libtpu: 0.0.40
codegen_flags: <defaults>
</compile_context>

<pallas_src>
import math

import jax
import jax.numpy as jnp
from jax.experimental import pallas as pl
from jax.experimental.pallas import tpu as pltpu  # noqa: F401  (kept for TPU-specific tuning hooks)

# ---- model dimensions (small, consistent with the module's forward) --------
B = 2          # batch
S = 8          # sequence length
H = 32         # hidden_size (d_model)
N_HEADS = 8    # MultiHeadedAttention(8, hidden_size, ...)
D_K = H // N_HEADS
D_FF = 2 * H   # PositionwiseFeedForward(hidden, hidden * 2, ...)
D1 = 256       # linear1: hidden -> 256
P = 4          # predicted_size
EPS = 1e-6
NEG = -1.0e9


def _layer_norm(x, gamma, beta):
    # Spec LayerNorm semantics: mean over last dim, unbiased std (divide by
    # H-1), eps added to the std (outside the sqrt).
    mean = jnp.mean(x, axis=-1, keepdims=True)
    var = jnp.sum((x - mean) ** 2, axis=-1, keepdims=True) * (1.0 / (H - 1))
    inv = pl.reciprocal(jnp.sqrt(var) + EPS, approx=True)
    return gamma * (x - mean) * inv + beta


def encoder_classifier_kernel(
    x_ref, mask_ref,
    wqkv_ref, bqkv_ref, wo_ref, hvec_ref,
    w1_ref, b1_ref, w2_ref,
    wl1_ref, bl1_ref, wl2_ref, bl2_ref,
    out_ref,
):
    x = x_ref[...]                       # (B*S, H) f32
    mask = mask_ref[...]                 # (B, S), 1.0 = valid token, 0.0 = pad

    hv = hvec_ref[...]                   # (6, H): bo, g1, be1, b2, g2, be2
    bo, g1, be1 = hv[0:1, :], hv[1:2, :], hv[2:3, :]
    b2, g2, be2 = hv[3:4, :], hv[4:5, :], hv[5:6, :]

    # ---- fused Q/K/V projection over the whole (B*S, H) slab ----
    qkv = jnp.dot(x, wqkv_ref[...], preferred_element_type=jnp.float32) + bqkv_ref[...]

    scale = 1.0 / math.sqrt(D_K)
    attn_rows = []
    for b in range(B):                          # static unroll (B = 2)
        rs = slice(b * S, (b + 1) * S)
        qb = qkv[rs, 0:H]
        kb = qkv[rs, H:2 * H]
        vb = qkv[rs, 2 * H:3 * H]
        # additive mask, computed once per batch element (hoisted out of head loop)
        add_mask = jnp.where(mask[b:b + 1, :] == 0.0, NEG, 0.0)        # (1, S)
        head_outs = []
        for h in range(N_HEADS):                # static unroll over heads
            cs = slice(h * D_K, (h + 1) * D_K)
            s = jnp.dot(qb[:, cs], kb[:, cs].T,
                        preferred_element_type=jnp.float32) * scale + add_mask
            s = s - jnp.max(s, axis=-1, keepdims=True)
            p = jnp.exp(s)
            p = p * pl.reciprocal(jnp.sum(p, axis=-1, keepdims=True), approx=True)
            head_outs.append(jnp.dot(p, vb[:, cs],
                                     preferred_element_type=jnp.float32))
        attn_rows.append(jnp.concatenate(head_outs, axis=-1))          # (S, H)
    attn = jnp.concatenate(attn_rows, axis=0)                          # (B*S, H)

    # ---- output projection + sublayer 1 (post-LN residual) ----
    o = jnp.dot(attn, wo_ref[...], preferred_element_type=jnp.float32) + bo
    x1 = _layer_norm(x + o, g1, be1)

    # ---- position-wise feed-forward + sublayer 2 ----
    h1 = jnp.maximum(
        jnp.dot(x1, w1_ref[...], preferred_element_type=jnp.float32) + b1_ref[...], 0.0)
    ff = jnp.dot(h1, w2_ref[...], preferred_element_type=jnp.float32) + b2
    x2 = _layer_norm(x1 + ff, g2, be2)

    # ---- mean pool over sequence (per batch element) + classifier head ----
    pooled = jnp.concatenate(
        [jnp.mean(x2[b * S:(b + 1) * S, :], axis=0, keepdims=True) for b in range(B)],
        axis=0)                                                        # (B, H)
    l1 = jnp.dot(pooled, wl1_ref[...], preferred_element_type=jnp.float32) + bl1_ref[...]
    logits = jnp.dot(l1, wl2_ref[...], preferred_element_type=jnp.float32) + bl2_ref[...]
    out_ref[...] = logits                                              # single (B, P) store


def bert_classification_head(bert_output, attention_mask, params):
    """bert_output: (B, S, H) f32; attention_mask: (B, S) (1 valid / 0 pad)."""
    (wq, bq, wk, bk, wv, bv, wo, bo, g1, be1,
     w1, b1, w2, b2, g2, be2, wl1, bl1, wl2, bl2) = params

    # Pack weights in the wrapper (free, XLA-side) to cut input-buffer count.
    wqkv = jnp.concatenate([wq, wk, wv], axis=1)                       # (H, 3H)
    bqkv = jnp.concatenate([bq, bk, bv], axis=1)                       # (1, 3H)
    hvec = jnp.concatenate([bo, g1, be1, b2, g2, be2], axis=0)         # (6, H)

    x2d = bert_output.reshape(B * S, H)
    mask = attention_mask.astype(jnp.float32).reshape(B, S)

    out = pl.pallas_call(
        encoder_classifier_kernel,
        out_shape=jax.ShapeDtypeStruct((B, P), jnp.float32),
    )(x2d, mask, wqkv, bqkv, wo, hvec, w1, b1, w2, wl1, bl1, wl2, bl2)
    return out


# ---- pure-JAX reference (same math) for a sanity check ---------------------
def reference_head(x, attention_mask, params):
    (wq, bq, wk, bk, wv, bv, wo, bo, g1, be1,
     w1, b1, w2, b2, g2, be2, wl1, bl1, wl2, bl2) = params

    def ln(x, g, b):
        m = jnp.mean(x, axis=-1, keepdims=True)
        var = jnp.sum((x - m) ** 2, axis=-1, keepdims=True) / (H - 1)
        return g * (x - m) / (jnp.sqrt(var) + EPS) + b

    q = x @ wq + bq
    k = x @ wk + bk
    v = x @ wv + bv
    qh = q.reshape(B, S, N_HEADS, D_K).transpose(0, 2, 1, 3)
    kh = k.reshape(B, S, N_HEADS, D_K).transpose(0, 2, 1, 3)
    vh = v.reshape(B, S, N_HEADS, D_K).transpose(0, 2, 1, 3)
    s = jnp.einsum("bhqd,bhkd->bhqk", qh, kh) / math.sqrt(D_K)
    mask = (attention_mask == 0).reshape(B, 1, 1, S)
    s = jnp.where(mask, NEG, s)
    p = jax.nn.softmax(s, axis=-1)
    o = jnp.einsum("bhqk,bhkd->bhqd", p, vh).transpose(0, 2, 1, 3).reshape(B, S, H)
    o = o @ wo + bo
    x1 = ln(x + o, g1, be1)
    ff = jnp.maximum(x1 @ w1 + b1, 0.0) @ w2 + b2
    x2 = ln(x1 + ff, g2, be2)
    pooled = jnp.mean(x2, axis=1)
    return (pooled @ wl1 + bl1) @ wl2 + bl2


def make_params(key):
    shapes = [
        (H, H), (1, H), (H, H), (1, H), (H, H), (1, H), (H, H), (1, H),  # q,k,v,o
        None, None,                                                        # ln1 (g, b)
        (H, D_FF), (1, D_FF), (D_FF, H), (1, H),                           # ff
        None, None,                                                        # ln2 (g, b)
        (H, D1), (1, D1), (D1, P), (1, P),                                 # linear1/2
    ]
    params = []
    keys = jax.random.split(key, len(shapes))
    ln_slot = 0
    for kk, shp in zip(keys, shapes):
        if shp is None:
            params.append(jnp.ones((1, H), jnp.float32) if ln_slot % 2 == 0
                          else jnp.zeros((1, H), jnp.float32))
            ln_slot += 1
        else:
            params.append((0.05 * jax.random.normal(kk, shp)).astype(jnp.float32))
    return params


if __name__ == "__main__":
    key = jax.random.PRNGKey(0)
    kx, kp = jax.random.split(key)

    bert_output = jax.random.normal(kx, (B, S, H), dtype=jnp.float32)
    attention_mask = jnp.array(
        [[1] * S, [1] * (S - 2) + [0, 0]], dtype=jnp.float32)   # second row padded
    params = make_params(kp)

    out = bert_classification_head(bert_output, attention_mask, params)
    out = jax.block_until_ready(out)

    ref = reference_head(bert_output, attention_mask, params)
    assert out.shape == (B, P)
    assert jnp.allclose(out, ref, rtol=1e-2, atol=1e-2), (
        f"mismatch: max abs diff {jnp.max(jnp.abs(out - ref))}")

    print("KERNEL_OK")
</pallas_src>

<mosaic_0001>
module attributes {stable_mosaic.version = 11 : i64} {
  func.func @encoder_classifier_kernel(%arg0: memref<16x32xf32, #tpu.memory_space<vmem>>, %arg1: memref<2x8xf32, #tpu.memory_space<vmem>>, %arg2: memref<32x96xf32, #tpu.memory_space<vmem>>, %arg3: memref<1x96xf32, #tpu.memory_space<vmem>>, %arg4: memref<32x32xf32, #tpu.memory_space<vmem>>, %arg5: memref<6x32xf32, #tpu.memory_space<vmem>>, %arg6: memref<32x64xf32, #tpu.memory_space<vmem>>, %arg7: memref<1x64xf32, #tpu.memory_space<vmem>>, %arg8: memref<64x32xf32, #tpu.memory_space<vmem>>, %arg9: memref<32x256xf32, #tpu.memory_space<vmem>>, %arg10: memref<1x256xf32, #tpu.memory_space<vmem>>, %arg11: memref<256x4xf32, #tpu.memory_space<vmem>>, %arg12: memref<1x4xf32, #tpu.memory_space<vmem>>, %arg13: memref<2x4xf32, #tpu.memory_space<vmem>>) attributes {dimension_semantics = [], scalar_prefetch = 0 : i64, scratch_operands = 0 : i64, tpu.core_type = #tpu.core_type<tc>} {
    %c0 = arith.constant 0 : index
    %c0_0 = arith.constant 0 : index
    %0 = vector.load %arg0[%c0, %c0_0] : memref<16x32xf32, #tpu.memory_space<vmem>>, vector<16x32xf32>
    %c0_1 = arith.constant 0 : index
    %c0_2 = arith.constant 0 : index
    %1 = vector.load %arg1[%c0_1, %c0_2] : memref<2x8xf32, #tpu.memory_space<vmem>>, vector<2x8xf32>
    %c0_3 = arith.constant 0 : index
    %c0_4 = arith.constant 0 : index
    %2 = vector.load %arg5[%c0_3, %c0_4] : memref<6x32xf32, #tpu.memory_space<vmem>>, vector<6x32xf32>
    %3 = vector.extract_strided_slice %2 {offsets = [0, 0], sizes = [1, 32], strides = [1, 1]} : vector<6x32xf32> to vector<1x32xf32>
    %4 = vector.extract_strided_slice %2 {offsets = [1, 0], sizes = [1, 32], strides = [1, 1]} : vector<6x32xf32> to vector<1x32xf32>
    %5 = vector.extract_strided_slice %2 {offsets = [2, 0], sizes = [1, 32], strides = [1, 1]} : vector<6x32xf32> to vector<1x32xf32>
    %6 = vector.extract_strided_slice %2 {offsets = [3, 0], sizes = [1, 32], strides = [1, 1]} : vector<6x32xf32> to vector<1x32xf32>
    %7 = vector.extract_strided_slice %2 {offsets = [4, 0], sizes = [1, 32], strides = [1, 1]} : vector<6x32xf32> to vector<1x32xf32>
    %8 = vector.extract_strided_slice %2 {offsets = [5, 0], sizes = [1, 32], strides = [1, 1]} : vector<6x32xf32> to vector<1x32xf32>
    %c0_5 = arith.constant 0 : index
    %c0_6 = arith.constant 0 : index
    %9 = vector.load %arg2[%c0_5, %c0_6] : memref<32x96xf32, #tpu.memory_space<vmem>>, vector<32x96xf32>
    %cst = arith.constant dense<0.000000e+00> : vector<16x96xf32>
    %10 = tpu.matmul %0, %9, %cst {dimension_numbers = #tpu.dot_dimension_numbers<[1], [0], [0], [1], [0, 0, 1, 1], [], []>} : vector<16x32xf32>, vector<32x96xf32>, vector<16x96xf32> -> vector<16x96xf32>
    %c0_7 = arith.constant 0 : index
    %c0_8 = arith.constant 0 : index
    %11 = vector.load %arg3[%c0_7, %c0_8] : memref<1x96xf32, #tpu.memory_space<vmem>>, vector<1x96xf32>
    %12 = vector.broadcast %11 : vector<1x96xf32> to vector<16x96xf32>
    %13 = arith.addf %10, %12 : vector<16x96xf32>
    %14 = vector.extract_strided_slice %13 {offsets = [0, 0], sizes = [8, 32], strides = [1, 1]} : vector<16x96xf32> to vector<8x32xf32>
    %15 = vector.extract_strided_slice %13 {offsets = [0, 32], sizes = [8, 32], strides = [1, 1]} : vector<16x96xf32> to vector<8x32xf32>
    %16 = vector.extract_strided_slice %13 {offsets = [0, 64], sizes = [8, 32], strides = [1, 1]} : vector<16x96xf32> to vector<8x32xf32>
    %17 = vector.extract_strided_slice %1 {offsets = [0, 0], sizes = [1, 8], strides = [1, 1]} : vector<2x8xf32> to vector<1x8xf32>
    %cst_9 = arith.constant 0.000000e+00 : f32
    %18 = vector.broadcast %cst_9 : f32 to vector<1x8xf32>
    %19 = arith.cmpf oeq, %17, %18 : vector<1x8xf32>
    %cst_10 = arith.constant -1.000000e+09 : f32
    %cst_11 = arith.constant 0.000000e+00 : f32
    %20 = vector.broadcast %cst_10 : f32 to vector<1x8xf32>
    %21 = vector.broadcast %cst_11 : f32 to vector<1x8xf32>
    %22 = arith.select %19, %20, %21 : vector<1x8xi1>, vector<1x8xf32>
    %23 = vector.extract_strided_slice %14 {offsets = [0, 0], sizes = [8, 4], strides = [1, 1]} : vector<8x32xf32> to vector<8x4xf32>
    %24 = vector.extract_strided_slice %15 {offsets = [0, 0], sizes = [8, 4], strides = [1, 1]} : vector<8x32xf32> to vector<8x4xf32>
    %25 = tpu.transpose %24, [1, 0] : vector<8x4xf32> -> vector<4x8xf32>
    %cst_12 = arith.constant dense<0.000000e+00> : vector<8x8xf32>
    %26 = tpu.matmul %23, %25, %cst_12 {dimension_numbers = #tpu.dot_dimension_numbers<[1], [0], [0], [1], [0, 0, 1, 1], [], []>} : vector<8x4xf32>, vector<4x8xf32>, vector<8x8xf32> -> vector<8x8xf32>
    %cst_13 = arith.constant 5.000000e-01 : f32
    %27 = vector.broadcast %cst_13 : f32 to vector<8x8xf32>
    %28 = arith.mulf %26, %27 : vector<8x8xf32>
    %29 = vector.broadcast %22 : vector<1x8xf32> to vector<8x8xf32>
    %30 = arith.addf %28, %29 : vector<8x8xf32>
    %cst_14 = arith.constant dense<0xFF800000> : vector<8xf32>
    %31 = vector.multi_reduction <maximumf>, %30, %cst_14 [1] : vector<8x8xf32> to vector<8xf32>
    %32 = vector.shape_cast %31 : vector<8xf32> to vector<8x1xf32>
    %33 = vector.broadcast %32 : vector<8x1xf32> to vector<8x8xf32>
    %34 = arith.subf %30, %33 : vector<8x8xf32>
    %35 = math.exp %34 : vector<8x8xf32>
    %cst_15 = arith.constant dense<0.000000e+00> : vector<8xf32>
    %36 = vector.multi_reduction <add>, %35, %cst_15 [1] : vector<8x8xf32> to vector<8xf32>
    %37 = vector.shape_cast %36 : vector<8xf32> to vector<8x1xf32>
    %38 = tpu.reciprocal %37 {approx = true} : vector<8x1xf32> -> vector<8x1xf32>
    %39 = vector.broadcast %38 : vector<8x1xf32> to vector<8x8xf32>
    %40 = arith.mulf %35, %39 : vector<8x8xf32>
    %41 = vector.extract_strided_slice %16 {offsets = [0, 0], sizes = [8, 4], strides = [1, 1]} : vector<8x32xf32> to vector<8x4xf32>
    %cst_16 = arith.constant dense<0.000000e+00> : vector<8x4xf32>
    %42 = tpu.matmul %40, %41, %cst_16 {dimension_numbers = #tpu.dot_dimension_numbers<[1], [0], [0], [1], [0, 0, 1, 1], [], []>} : vector<8x8xf32>, vector<8x4xf32>, vector<8x4xf32> -> vector<8x4xf32>
    %43 = vector.extract_strided_slice %14 {offsets = [0, 4], sizes = [8, 4], strides = [1, 1]} : vector<8x32xf32> to vector<8x4xf32>
    %44 = vector.extract_strided_slice %15 {offsets = [0, 4], sizes = [8, 4], strides = [1, 1]} : vector<8x32xf32> to vector<8x4xf32>
    %45 = tpu.transpose %44, [1, 0] : vector<8x4xf32> -> vector<4x8xf32>
    %cst_17 = arith.constant dense<0.000000e+00> : vector<8x8xf32>
    %46 = tpu.matmul %43, %45, %cst_17 {dimension_numbers = #tpu.dot_dimension_numbers<[1], [0], [0], [1], [0, 0, 1, 1], [], []>} : vector<8x4xf32>, vector<4x8xf32>, vector<8x8xf32> -> vector<8x8xf32>
    %cst_18 = arith.constant 5.000000e-01 : f32
    %47 = vector.broadcast %cst_18 : f32 to vector<8x8xf32>
    %48 = arith.mulf %46, %47 : vector<8x8xf32>
    %49 = vector.broadcast %22 : vector<1x8xf32> to vector<8x8xf32>
    %50 = arith.addf %48, %49 : vector<8x8xf32>
    %cst_19 = arith.constant dense<0xFF800000> : vector<8xf32>
    %51 = vector.multi_reduction <maximumf>, %50, %cst_19 [1] : vector<8x8xf32> to vector<8xf32>
    %52 = vector.shape_cast %51 : vector<8xf32> to vector<8x1xf32>
    %53 = vector.broadcast %52 : vector<8x1xf32> to vector<8x8xf32>
    %54 = arith.subf %50, %53 : vector<8x8xf32>
    %55 = math.exp %54 : vector<8x8xf32>
    %cst_20 = arith.constant dense<0.000000e+00> : vector<8xf32>
    %56 = vector.multi_reduction <add>, %55, %cst_20 [1] : vector<8x8xf32> to vector<8xf32>
    %57 = vector.shape_cast %56 : vector<8xf32> to vector<8x1xf32>
    %58 = tpu.reciprocal %57 {approx = true} : vector<8x1xf32> -> vector<8x1xf32>
    %59 = vector.broadcast %58 : vector<8x1xf32> to vector<8x8xf32>
    %60 = arith.mulf %55, %59 : vector<8x8xf32>
    %61 = vector.extract_strided_slice %16 {offsets = [0, 4], sizes = [8, 4], strides = [1, 1]} : vector<8x32xf32> to vector<8x4xf32>
    %cst_21 = arith.constant dense<0.000000e+00> : vector<8x4xf32>
    %62 = tpu.matmul %60, %61, %cst_21 {dimension_numbers = #tpu.dot_dimension_numbers<[1], [0], [0], [1], [0, 0, 1, 1], [], []>} : vector<8x8xf32>, vector<8x4xf32>, vector<8x4xf32> -> vector<8x4xf32>
    %63 = vector.extract_strided_slice %14 {offsets = [0, 8], sizes = [8, 4], strides = [1, 1]} : vector<8x32xf32> to vector<8x4xf32>
    %64 = vector.extract_strided_slice %15 {offsets = [0, 8], sizes = [8, 4], strides = [1, 1]} : vector<8x32xf32> to vector<8x4xf32>
    %65 = tpu.transpose %64, [1, 0] : vector<8x4xf32> -> vector<4x8xf32>
    %cst_22 = arith.constant dense<0.000000e+00> : vector<8x8xf32>
    %66 = tpu.matmul %63, %65, %cst_22 {dimension_numbers = #tpu.dot_dimension_numbers<[1], [0], [0], [1], [0, 0, 1, 1], [], []>} : vector<8x4xf32>, vector<4x8xf32>, vector<8x8xf32> -> vector<8x8xf32>
    %cst_23 = arith.constant 5.000000e-01 : f32
    %67 = vector.broadcast %cst_23 : f32 to vector<8x8xf32>
    %68 = arith.mulf %66, %67 : vector<8x8xf32>
    %69 = vector.broadcast %22 : vector<1x8xf32> to vector<8x8xf32>
    %70 = arith.addf %68, %69 : vector<8x8xf32>
    %cst_24 = arith.constant dense<0xFF800000> : vector<8xf32>
    %71 = vector.multi_reduction <maximumf>, %70, %cst_24 [1] : vector<8x8xf32> to vector<8xf32>
    %72 = vector.shape_cast %71 : vector<8xf32> to vector<8x1xf32>
    %73 = vector.broadcast %72 : vector<8x1xf32> to vector<8x8xf32>
    %74 = arith.subf %70, %73 : vector<8x8xf32>
    %75 = math.exp %74 : vector<8x8xf32>
    %cst_25 = arith.constant dense<0.000000e+00> : vector<8xf32>
    %76 = vector.multi_reduction <add>, %75, %cst_25 [1] : vector<8x8xf32> to vector<8xf32>
    %77 = vector.shape_cast %76 : vector<8xf32> to vector<8x1xf32>
    %78 = tpu.reciprocal %77 {approx = true} : vector<8x1xf32> -> vector<8x1xf32>
    %79 = vector.broadcast %78 : vector<8x1xf32> to vector<8x8xf32>
    %80 = arith.mulf %75, %79 : vector<8x8xf32>
    %81 = vector.extract_strided_slice %16 {offsets = [0, 8], sizes = [8, 4], strides = [1, 1]} : vector<8x32xf32> to vector<8x4xf32>
    %cst_26 = arith.constant dense<0.000000e+00> : vector<8x4xf32>
    %82 = tpu.matmul %80, %81, %cst_26 {dimension_numbers = #tpu.dot_dimension_numbers<[1], [0], [0], [1], [0, 0, 1, 1], [], []>} : vector<8x8xf32>, vector<8x4xf32>, vector<8x4xf32> -> vector<8x4xf32>
    %83 = vector.extract_strided_slice %14 {offsets = [0, 12], sizes = [8, 4], strides = [1, 1]} : vector<8x32xf32> to vector<8x4xf32>
    %84 = vector.extract_strided_slice %15 {offsets = [0, 12], sizes = [8, 4], strides = [1, 1]} : vector<8x32xf32> to vector<8x4xf32>
    %85 = tpu.transpose %84, [1, 0] : vector<8x4xf32> -> vector<4x8xf32>
    %cst_27 = arith.constant dense<0.000000e+00> : vector<8x8xf32>
    %86 = tpu.matmul %83, %85, %cst_27 {dimension_numbers = #tpu.dot_dimension_numbers<[1], [0], [0], [1], [0, 0, 1, 1], [], []>} : vector<8x4xf32>, vector<4x8xf32>, vector<8x8xf32> -> vector<8x8xf32>
    %cst_28 = arith.constant 5.000000e-01 : f32
    %87 = vector.broadcast %cst_28 : f32 to vector<8x8xf32>
    %88 = arith.mulf %86, %87 : vector<8x8xf32>
    %89 = vector.broadcast %22 : vector<1x8xf32> to vector<8x8xf32>
    %90 = arith.addf %88, %89 : vector<8x8xf32>
    %cst_29 = arith.constant dense<0xFF800000> : vector<8xf32>
    %91 = vector.multi_reduction <maximumf>, %90, %cst_29 [1] : vector<8x8xf32> to vector<8xf32>
    %92 = vector.shape_cast %91 : vector<8xf32> to vector<8x1xf32>
    %93 = vector.broadcast %92 : vector<8x1xf32> to vector<8x8xf32>
    %94 = arith.subf %90, %93 : vector<8x8xf32>
    %95 = math.exp %94 : vector<8x8xf32>
    %cst_30 = arith.constant dense<0.000000e+00> : vector<8xf32>
    %96 = vector.multi_reduction <add>, %95, %cst_30 [1] : vector<8x8xf32> to vector<8xf32>
    %97 = vector.shape_cast %96 : vector<8xf32> to vector<8x1xf32>
    %98 = tpu.reciprocal %97 {approx = true} : vector<8x1xf32> -> vector<8x1xf32>
    %99 = vector.broadcast %98 : vector<8x1xf32> to vector<8x8xf32>
    %100 = arith.mulf %95, %99 : vector<8x8xf32>
    %101 = vector.extract_strided_slice %16 {offsets = [0, 12], sizes = [8, 4], strides = [1, 1]} : vector<8x32xf32> to vector<8x4xf32>
    %cst_31 = arith.constant dense<0.000000e+00> : vector<8x4xf32>
    %102 = tpu.matmul %100, %101, %cst_31 {dimension_numbers = #tpu.dot_dimension_numbers<[1], [0], [0], [1], [0, 0, 1, 1], [], []>} : vector<8x8xf32>, vector<8x4xf32>, vector<8x4xf32> -> vector<8x4xf32>
    %103 = vector.extract_strided_slice %14 {offsets = [0, 16], sizes = [8, 4], strides = [1, 1]} : vector<8x32xf32> to vector<8x4xf32>
    %104 = vector.extract_strided_slice %15 {offsets = [0, 16], sizes = [8, 4], strides = [1, 1]} : vector<8x32xf32> to vector<8x4xf32>
    %105 = tpu.transpose %104, [1, 0] : vector<8x4xf32> -> vector<4x8xf32>
    %cst_32 = arith.constant dense<0.000000e+00> : vector<8x8xf32>
    %106 = tpu.matmul %103, %105, %cst_32 {dimension_numbers = #tpu.dot_dimension_numbers<[1], [0], [0], [1], [0, 0, 1, 1], [], []>} : vector<8x4xf32>, vector<4x8xf32>, vector<8x8xf32> -> vector<8x8xf32>
    %cst_33 = arith.constant 5.000000e-01 : f32
    %107 = vector.broadcast %cst_33 : f32 to vector<8x8xf32>
    %108 = arith.mulf %106, %107 : vector<8x8xf32>
    %109 = vector.broadcast %22 : vector<1x8xf32> to vector<8x8xf32>
    %110 = arith.addf %108, %109 : vector<8x8xf32>
    %cst_34 = arith.constant dense<0xFF800000> : vector<8xf32>
    %111 = vector.multi_reduction <maximumf>, %110, %cst_34 [1] : vector<8x8xf32> to vector<8xf32>
    %112 = vector.shape_cast %111 : vector<8xf32> to vector<8x1xf32>
    %113 = vector.broadcast %112 : vector<8x1xf32> to vector<8x8xf32>
    %114 = arith.subf %110, %113 : vector<8x8xf32>
    %115 = math.exp %114 : vector<8x8xf32>
    %cst_35 = arith.constant dense<0.000000e+00> : vector<8xf32>
    %116 = vector.multi_reduction <add>, %115, %cst_35 [1] : vector<8x8xf32> to vector<8xf32>
    %117 = vector.shape_cast %116 : vector<8xf32> to vector<8x1xf32>
    %118 = tpu.reciprocal %117 {approx = true} : vector<8x1xf32> -> vector<8x1xf32>
    %119 = vector.broadcast %118 : vector<8x1xf32> to vector<8x8xf32>
    %120 = arith.mulf %115, %119 : vector<8x8xf32>
    %121 = vector.extract_strided_slice %16 {offsets = [0, 16], sizes = [8, 4], strides = [1, 1]} : vector<8x32xf32> to vector<8x4xf32>
    %cst_36 = arith.constant dense<0.000000e+00> : vector<8x4xf32>
    %122 = tpu.matmul %120, %121, %cst_36 {dimension_numbers = #tpu.dot_dimension_numbers<[1], [0], [0], [1], [0, 0, 1, 1], [], []>} : vector<8x8xf32>, vector<8x4xf32>, vector<8x4xf32> -> vector<8x4xf32>
    %123 = vector.extract_strided_slice %14 {offsets = [0, 20], sizes = [8, 4], strides = [1, 1]} : vector<8x32xf32> to vector<8x4xf32>
    %124 = vector.extract_strided_slice %15 {offsets = [0, 20], sizes = [8, 4], strides = [1, 1]} : vector<8x32xf32> to vector<8x4xf32>
    %125 = tpu.transpose %124, [1, 0] : vector<8x4xf32> -> vector<4x8xf32>
    %cst_37 = arith.constant dense<0.000000e+00> : vector<8x8xf32>
    %126 = tpu.matmul %123, %125, %cst_37 {dimension_numbers = #tpu.dot_dimension_numbers<[1], [0], [0], [1], [0, 0, 1, 1], [], []>} : vector<8x4xf32>, vector<4x8xf32>, vector<8x8xf32> -> vector<8x8xf32>
    %cst_38 = arith.constant 5.000000e-01 : f32
    %127 = vector.broadcast %cst_38 : f32 to vector<8x8xf32>
    %128 = arith.mulf %126, %127 : vector<8x8xf32>
    %129 = vector.broadcast %22 : vector<1x8xf32> to vector<8x8xf32>
    %130 = arith.addf %128, %129 : vector<8x8xf32>
    %cst_39 = arith.constant dense<0xFF800000> : vector<8xf32>
    %131 = vector.multi_reduction <maximumf>, %130, %cst_39 [1] : vector<8x8xf32> to vector<8xf32>
    %132 = vector.shape_cast %131 : vector<8xf32> to vector<8x1xf32>
    %133 = vector.broadcast %132 : vector<8x1xf32> to vector<8x8xf32>
    %134 = arith.subf %130, %133 : vector<8x8xf32>
    %135 = math.exp %134 : vector<8x8xf32>
    %cst_40 = arith.constant dense<0.000000e+00> : vector<8xf32>
    %136 = vector.multi_reduction <add>, %135, %cst_40 [1] : vector<8x8xf32> to vector<8xf32>
    %137 = vector.shape_cast %136 : vector<8xf32> to vector<8x1xf32>
    %138 = tpu.reciprocal %137 {approx = true} : vector<8x1xf32> -> vector<8x1xf32>
    %139 = vector.broadcast %138 : vector<8x1xf32> to vector<8x8xf32>
    %140 = arith.mulf %135, %139 : vector<8x8xf32>
    %141 = vector.extract_strided_slice %16 {offsets = [0, 20], sizes = [8, 4], strides = [1, 1]} : vector<8x32xf32> to vector<8x4xf32>
    %cst_41 = arith.constant dense<0.000000e+00> : vector<8x4xf32>
    %142 = tpu.matmul %140, %141, %cst_41 {dimension_numbers = #tpu.dot_dimension_numbers<[1], [0], [0], [1], [0, 0, 1, 1], [], []>} : vector<8x8xf32>, vector<8x4xf32>, vector<8x4xf32> -> vector<8x4xf32>
    %143 = vector.extract_strided_slice %14 {offsets = [0, 24], sizes = [8, 4], strides = [1, 1]} : vector<8x32xf32> to vector<8x4xf32>
    %144 = vector.extract_strided_slice %15 {offsets = [0, 24], sizes = [8, 4], strides = [1, 1]} : vector<8x32xf32> to vector<8x4xf32>
    %145 = tpu.transpose %144, [1, 0] : vector<8x4xf32> -> vector<4x8xf32>
    %cst_42 = arith.constant dense<0.000000e+00> : vector<8x8xf32>
    %146 = tpu.matmul %143, %145, %cst_42 {dimension_numbers = #tpu.dot_dimension_numbers<[1], [0], [0], [1], [0, 0, 1, 1], [], []>} : vector<8x4xf32>, vector<4x8xf32>, vector<8x8xf32> -> vector<8x8xf32>
    %cst_43 = arith.constant 5.000000e-01 : f32
    %147 = vector.broadcast %cst_43 : f32 to vector<8x8xf32>
    %148 = arith.mulf %146, %147 : vector<8x8xf32>
    %149 = vector.broadcast %22 : vector<1x8xf32> to vector<8x8xf32>
    %150 = arith.addf %148, %149 : vector<8x8xf32>
    %cst_44 = arith.constant dense<0xFF800000> : vector<8xf32>
    %151 = vector.multi_reduction <maximumf>, %150, %cst_44 [1] : vector<8x8xf32> to vector<8xf32>
    %152 = vector.shape_cast %151 : vector<8xf32> to vector<8x1xf32>
    %153 = vector.broadcast %152 : vector<8x1xf32> to vector<8x8xf32>
    %154 = arith.subf %150, %153 : vector<8x8xf32>
    %155 = math.exp %154 : vector<8x8xf32>
    %cst_45 = arith.constant dense<0.000000e+00> : vector<8xf32>
    %156 = vector.multi_reduction <add>, %155, %cst_45 [1] : vector<8x8xf32> to vector<8xf32>
    %157 = vector.shape_cast %156 : vector<8xf32> to vector<8x1xf32>
    %158 = tpu.reciprocal %157 {approx = true} : vector<8x1xf32> -> vector<8x1xf32>
    %159 = vector.broadcast %158 : vector<8x1xf32> to vector<8x8xf32>
    %160 = arith.mulf %155, %159 : vector<8x8xf32>
    %161 = vector.extract_strided_slice %16 {offsets = [0, 24], sizes = [8, 4], strides = [1, 1]} : vector<8x32xf32> to vector<8x4xf32>
    %cst_46 = arith.constant dense<0.000000e+00> : vector<8x4xf32>
    %162 = tpu.matmul %160, %161, %cst_46 {dimension_numbers = #tpu.dot_dimension_numbers<[1], [0], [0], [1], [0, 0, 1, 1], [], []>} : vector<8x8xf32>, vector<8x4xf32>, vector<8x4xf32> -> vector<8x4xf32>
    %163 = vector.extract_strided_slice %14 {offsets = [0, 28], sizes = [8, 4], strides = [1, 1]} : vector<8x32xf32> to vector<8x4xf32>
    %164 = vector.extract_strided_slice %15 {offsets = [0, 28], sizes = [8, 4], strides = [1, 1]} : vector<8x32xf32> to vector<8x4xf32>
    %165 = tpu.transpose %164, [1, 0] : vector<8x4xf32> -> vector<4x8xf32>
    %cst_47 = arith.constant dense<0.000000e+00> : vector<8x8xf32>
    %166 = tpu.matmul %163, %165, %cst_47 {dimension_numbers = #tpu.dot_dimension_numbers<[1], [0], [0], [1], [0, 0, 1, 1], [], []>} : vector<8x4xf32>, vector<4x8xf32>, vector<8x8xf32> -> vector<8x8xf32>
    %cst_48 = arith.constant 5.000000e-01 : f32
    %167 = vector.broadcast %cst_48 : f32 to vector<8x8xf32>
    %168 = arith.mulf %166, %167 : vector<8x8xf32>
    %169 = vector.broadcast %22 : vector<1x8xf32> to vector<8x8xf32>
    %170 = arith.addf %168, %169 : vector<8x8xf32>
    %cst_49 = arith.constant dense<0xFF800000> : vector<8xf32>
    %171 = vector.multi_reduction <maximumf>, %170, %cst_49 [1] : vector<8x8xf32> to vector<8xf32>
    %172 = vector.shape_cast %171 : vector<8xf32> to vector<8x1xf32>
    %173 = vector.broadcast %172 : vector<8x1xf32> to vector<8x8xf32>
    %174 = arith.subf %170, %173 : vector<8x8xf32>
    %175 = math.exp %174 : vector<8x8xf32>
    %cst_50 = arith.constant dense<0.000000e+00> : vector<8xf32>
    %176 = vector.multi_reduction <add>, %175, %cst_50 [1] : vector<8x8xf32> to vector<8xf32>
    %177 = vector.shape_cast %176 : vector<8xf32> to vector<8x1xf32>
    %178 = tpu.reciprocal %177 {approx = true} : vector<8x1xf32> -> vector<8x1xf32>
    %179 = vector.broadcast %178 : vector<8x1xf32> to vector<8x8xf32>
    %180 = arith.mulf %175, %179 : vector<8x8xf32>
    %181 = vector.extract_strided_slice %16 {offsets = [0, 28], sizes = [8, 4], strides = [1, 1]} : vector<8x32xf32> to vector<8x4xf32>
    %cst_51 = arith.constant dense<0.000000e+00> : vector<8x4xf32>
    %182 = tpu.matmul %180, %181, %cst_51 {dimension_numbers = #tpu.dot_dimension_numbers<[1], [0], [0], [1], [0, 0, 1, 1], [], []>} : vector<8x8xf32>, vector<8x4xf32>, vector<8x4xf32> -> vector<8x4xf32>
    %183 = tpu.concatenate %42, %62, %82, %102, %122, %142, %162, %182 in 1 : vector<8x4xf32>, vector<8x4xf32>, vector<8x4xf32>, vector<8x4xf32>, vector<8x4xf32>, vector<8x4xf32>, vector<8x4xf32>, vector<8x4xf32> -> vector<8x32xf32>
    %184 = vector.extract_strided_slice %13 {offsets = [8, 0], sizes = [8, 32], strides = [1, 1]} : vector<16x96xf32> to vector<8x32xf32>
    %185 = vector.extract_strided_slice %13 {offsets = [8, 32], sizes = [8, 32], strides = [1, 1]} : vector<16x96xf32> to vector<8x32xf32>
    %186 = vector.extract_strided_slice %13 {offsets = [8, 64], sizes = [8, 32], strides = [1, 1]} : vector<16x96xf32> to vector<8x32xf32>
    %187 = vector.extract_strided_slice %1 {offsets = [1, 0], sizes = [1, 8], strides = [1, 1]} : vector<2x8xf32> to vector<1x8xf32>
    %cst_52 = arith.constant 0.000000e+00 : f32
    %188 = vector.broadcast %cst_52 : f32 to vector<1x8xf32>
    %189 = arith.cmpf oeq, %187, %188 : vector<1x8xf32>
    %cst_53 = arith.constant -1.000000e+09 : f32
    %cst_54 = arith.constant 0.000000e+00 : f32
    %190 = vector.broadcast %cst_53 : f32 to vector<1x8xf32>
    %191 = vector.broadcast %cst_54 : f32 to vector<1x8xf32>
    %192 = arith.select %189, %190, %191 : vector<1x8xi1>, vector<1x8xf32>
    %193 = vector.extract_strided_slice %184 {offsets = [0, 0], sizes = [8, 4], strides = [1, 1]} : vector<8x32xf32> to vector<8x4xf32>
    %194 = vector.extract_strided_slice %185 {offsets = [0, 0], sizes = [8, 4], strides = [1, 1]} : vector<8x32xf32> to vector<8x4xf32>
    %195 = tpu.transpose %194, [1, 0] : vector<8x4xf32> -> vector<4x8xf32>
    %cst_55 = arith.constant dense<0.000000e+00> : vector<8x8xf32>
    %196 = tpu.matmul %193, %195, %cst_55 {dimension_numbers = #tpu.dot_dimension_numbers<[1], [0], [0], [1], [0, 0, 1, 1], [], []>} : vector<8x4xf32>, vector<4x8xf32>, vector<8x8xf32> -> vector<8x8xf32>
    %cst_56 = arith.constant 5.000000e-01 : f32
    %197 = vector.broadcast %cst_56 : f32 to vector<8x8xf32>
    %198 = arith.mulf %196, %197 : vector<8x8xf32>
    %199 = vector.broadcast %192 : vector<1x8xf32> to vector<8x8xf32>
    %200 = arith.addf %198, %199 : vector<8x8xf32>
    %cst_57 = arith.constant dense<0xFF800000> : vector<8xf32>
    %201 = vector.multi_reduction <maximumf>, %200, %cst_57 [1] : vector<8x8xf32> to vector<8xf32>
    %202 = vector.shape_cast %201 : vector<8xf32> to vector<8x1xf32>
    %203 = vector.broadcast %202 : vector<8x1xf32> to vector<8x8xf32>
    %204 = arith.subf %200, %203 : vector<8x8xf32>
    %205 = math.exp %204 : vector<8x8xf32>
    %cst_58 = arith.constant dense<0.000000e+00> : vector<8xf32>
    %206 = vector.multi_reduction <add>, %205, %cst_58 [1] : vector<8x8xf32> to vector<8xf32>
    %207 = vector.shape_cast %206 : vector<8xf32> to vector<8x1xf32>
    %208 = tpu.reciprocal %207 {approx = true} : vector<8x1xf32> -> vector<8x1xf32>
    %209 = vector.broadcast %208 : vector<8x1xf32> to vector<8x8xf32>
    %210 = arith.mulf %205, %209 : vector<8x8xf32>
    %211 = vector.extract_strided_slice %186 {offsets = [0, 0], sizes = [8, 4], strides = [1, 1]} : vector<8x32xf32> to vector<8x4xf32>
    %cst_59 = arith.constant dense<0.000000e+00> : vector<8x4xf32>
    %212 = tpu.matmul %210, %211, %cst_59 {dimension_numbers = #tpu.dot_dimension_numbers<[1], [0], [0], [1], [0, 0, 1, 1], [], []>} : vector<8x8xf32>, vector<8x4xf32>, vector<8x4xf32> -> vector<8x4xf32>
    %213 = vector.extract_strided_slice %184 {offsets = [0, 4], sizes = [8, 4], strides = [1, 1]} : vector<8x32xf32> to vector<8x4xf32>
    %214 = vector.extract_strided_slice %185 {offsets = [0, 4], sizes = [8, 4], strides = [1, 1]} : vector<8x32xf32> to vector<8x4xf32>
    %215 = tpu.transpose %214, [1, 0] : vector<8x4xf32> -> vector<4x8xf32>
    %cst_60 = arith.constant dense<0.000000e+00> : vector<8x8xf32>
    %216 = tpu.matmul %213, %215, %cst_60 {dimension_numbers = #tpu.dot_dimension_numbers<[1], [0], [0], [1], [0, 0, 1, 1], [], []>} : vector<8x4xf32>, vector<4x8xf32>, vector<8x8xf32> -> vector<8x8xf32>
    %cst_61 = arith.constant 5.000000e-01 : f32
    %217 = vector.broadcast %cst_61 : f32 to vector<8x8xf32>
    %218 = arith.mulf %216, %217 : vector<8x8xf32>
    %219 = vector.broadcast %192 : vector<1x8xf32> to vector<8x8xf32>
    %220 = arith.addf %218, %219 : vector<8x8xf32>
    %cst_62 = arith.constant dense<0xFF800000> : vector<8xf32>
    %221 = vector.multi_reduction <maximumf>, %220, %cst_62 [1] : vector<8x8xf32> to vector<8xf32>
    %222 = vector.shape_cast %221 : vector<8xf32> to vector<8x1xf32>
    %223 = vector.broadcast %222 : vector<8x1xf32> to vector<8x8xf32>
    %224 = arith.subf %220, %223 : vector<8x8xf32>
    %225 = math.exp %224 : vector<8x8xf32>
    %cst_63 = arith.constant dense<0.000000e+00> : vector<8xf32>
    %226 = vector.multi_reduction <add>, %225, %cst_63 [1] : vector<8x8xf32> to vector<8xf32>
    %227 = vector.shape_cast %226 : vector<8xf32> to vector<8x1xf32>
    %228 = tpu.reciprocal %227 {approx = true} : vector<8x1xf32> -> vector<8x1xf32>
    %229 = vector.broadcast %228 : vector<8x1xf32> to vector<8x8xf32>
    %230 = arith.mulf %225, %229 : vector<8x8xf32>
    %231 = vector.extract_strided_slice %186 {offsets = [0, 4], sizes = [8, 4], strides = [1, 1]} : vector<8x32xf32> to vector<8x4xf32>
    %cst_64 = arith.constant dense<0.000000e+00> : vector<8x4xf32>
    %232 = tpu.matmul %230, %231, %cst_64 {dimension_numbers = #tpu.dot_dimension_numbers<[1], [0], [0], [1], [0, 0, 1, 1], [], []>} : vector<8x8xf32>, vector<8x4xf32>, vector<8x4xf32> -> vector<8x4xf32>
    %233 = vector.extract_strided_slice %184 {offsets = [0, 8], sizes = [8, 4], strides = [1, 1]} : vector<8x32xf32> to vector<8x4xf32>
    %234 = vector.extract_strided_slice %185 {offsets = [0, 8], sizes = [8, 4], strides = [1, 1]} : vector<8x32xf32> to vector<8x4xf32>
    %235 = tpu.transpose %234, [1, 0] : vector<8x4xf32> -> vector<4x8xf32>
    %cst_65 = arith.constant dense<0.000000e+00> : vector<8x8xf32>
    %236 = tpu.matmul %233, %235, %cst_65 {dimension_numbers = #tpu.dot_dimension_numbers<[1], [0], [0], [1], [0, 0, 1, 1], [], []>} : vector<8x4xf32>, vector<4x8xf32>, vector<8x8xf32> -> vector<8x8xf32>
    %cst_66 = arith.constant 5.000000e-01 : f32
    %237 = vector.broadcast %cst_66 : f32 to vector<8x8xf32>
    %238 = arith.mulf %236, %237 : vector<8x8xf32>
    %239 = vector.broadcast %192 : vector<1x8xf32> to vector<8x8xf32>
    %240 = arith.addf %238, %239 : vector<8x8xf32>
    %cst_67 = arith.constant dense<0xFF800000> : vector<8xf32>
    %241 = vector.multi_reduction <maximumf>, %240, %cst_67 [1] : vector<8x8xf32> to vector<8xf32>
    %242 = vector.shape_cast %241 : vector<8xf32> to vector<8x1xf32>
    %243 = vector.broadcast %242 : vector<8x1xf32> to vector<8x8xf32>
    %244 = arith.subf %240, %243 : vector<8x8xf32>
    %245 = math.exp %244 : vector<8x8xf32>
    %cst_68 = arith.constant dense<0.000000e+00> : vector<8xf32>
    %246 = vector.multi_reduction <add>, %245, %cst_68 [1] : vector<8x8xf32> to vector<8xf32>
    %247 = vector.shape_cast %246 : vector<8xf32> to vector<8x1xf32>
    %248 = tpu.reciprocal %247 {approx = true} : vector<8x1xf32> -> vector<8x1xf32>
    %249 = vector.broadcast %248 : vector<8x1xf32> to vector<8x8xf32>
    %250 = arith.mulf %245, %249 : vector<8x8xf32>
    %251 = vector.extract_strided_slice %186 {offsets = [0, 8], sizes = [8, 4], strides = [1, 1]} : vector<8x32xf32> to vector<8x4xf32>
    %cst_69 = arith.constant dense<0.000000e+00> : vector<8x4xf32>
    %252 = tpu.matmul %250, %251, %cst_69 {dimension_numbers = #tpu.dot_dimension_numbers<[1], [0], [0], [1], [0, 0, 1, 1], [], []>} : vector<8x8xf32>, vector<8x4xf32>, vector<8x4xf32> -> vector<8x4xf32>
    %253 = vector.extract_strided_slice %184 {offsets = [0, 12], sizes = [8, 4], strides = [1, 1]} : vector<8x32xf32> to vector<8x4xf32>
    %254 = vector.extract_strided_slice %185 {offsets = [0, 12], sizes = [8, 4], strides = [1, 1]} : vector<8x32xf32> to vector<8x4xf32>
    %255 = tpu.transpose %254, [1, 0] : vector<8x4xf32> -> vector<4x8xf32>
    %cst_70 = arith.constant dense<0.000000e+00> : vector<8x8xf32>
    %256 = tpu.matmul %253, %255, %cst_70 {dimension_numbers = #tpu.dot_dimension_numbers<[1], [0], [0], [1], [0, 0, 1, 1], [], []>} : vector<8x4xf32>, vector<4x8xf32>, vector<8x8xf32> -> vector<8x8xf32>
    %cst_71 = arith.constant 5.000000e-01 : f32
    %257 = vector.broadcast %cst_71 : f32 to vector<8x8xf32>
    %258 = arith.mulf %256, %257 : vector<8x8xf32>
    %259 = vector.broadcast %192 : vector<1x8xf32> to vector<8x8xf32>
    %260 = arith.addf %258, %259 : vector<8x8xf32>
    %cst_72 = arith.constant dense<0xFF800000> : vector<8xf32>
    %261 = vector.multi_reduction <maximumf>, %260, %cst_72 [1] : vector<8x8xf32> to vector<8xf32>
    %262 = vector.shape_cast %261 : vector<8xf32> to vector<8x1xf32>
    %263 = vector.broadcast %262 : vector<8x1xf32> to vector<8x8xf32>
    %264 = arith.subf %260, %263 : vector<8x8xf32>
    %265 = math.exp %264 : vector<8x8xf32>
    %cst_73 = arith.constant dense<0.000000e+00> : vector<8xf32>
    %266 = vector.multi_reduction <add>, %265, %cst_73 [1] : vector<8x8xf32> to vector<8xf32>
    %267 = vector.shape_cast %266 : vector<8xf32> to vector<8x1xf32>
    %268 = tpu.reciprocal %267 {approx = true} : vector<8x1xf32> -> vector<8x1xf32>
    %269 = vector.broadcast %268 : vector<8x1xf32> to vector<8x8xf32>
    %270 = arith.mulf %265, %269 : vector<8x8xf32>
    %271 = vector.extract_strided_slice %186 {offsets = [0, 12], sizes = [8, 4], strides = [1, 1]} : vector<8x32xf32> to vector<8x4xf32>
    %cst_74 = arith.constant dense<0.000000e+00> : vector<8x4xf32>
    %272 = tpu.matmul %270, %271, %cst_74 {dimension_numbers = #tpu.dot_dimension_numbers<[1], [0], [0], [1], [0, 0, 1, 1], [], []>} : vector<8x8xf32>, vector<8x4xf32>, vector<8x4xf32> -> vector<8x4xf32>
    %273 = vector.extract_strided_slice %184 {offsets = [0, 16], sizes = [8, 4], strides = [1, 1]} : vector<8x32xf32> to vector<8x4xf32>
    %274 = vector.extract_strided_slice %185 {offsets = [0, 16], sizes = [8, 4], strides = [1, 1]} : vector<8x32xf32> to vector<8x4xf32>
    %275 = tpu.transpose %274, [1, 0] : vector<8x4xf32> -> vector<4x8xf32>
    %cst_75 = arith.constant dense<0.000000e+00> : vector<8x8xf32>
    %276 = tpu.matmul %273, %275, %cst_75 {dimension_numbers = #tpu.dot_dimension_numbers<[1], [0], [0], [1], [0, 0, 1, 1], [], []>} : vector<8x4xf32>, vector<4x8xf32>, vector<8x8xf32> -> vector<8x8xf32>
    %cst_76 = arith.constant 5.000000e-01 : f32
    %277 = vector.broadcast %cst_76 : f32 to vector<8x8xf32>
    %278 = arith.mulf %276, %277 : vector<8x8xf32>
    %279 = vector.broadcast %192 : vector<1x8xf32> to vector<8x8xf32>
    %280 = arith.addf %278, %279 : vector<8x8xf32>
    %cst_77 = arith.constant dense<0xFF800000> : vector<8xf32>
    %281 = vector.multi_reduction <maximumf>, %280, %cst_77 [1] : vector<8x8xf32> to vector<8xf32>
    %282 = vector.shape_cast %281 : vector<8xf32> to vector<8x1xf32>
    %283 = vector.broadcast %282 : vector<8x1xf32> to vector<8x8xf32>
    %284 = arith.subf %280, %283 : vector<8x8xf32>
    %285 = math.exp %284 : vector<8x8xf32>
    %cst_78 = arith.constant dense<0.000000e+00> : vector<8xf32>
    %286 = vector.multi_reduction <add>, %285, %cst_78 [1] : vector<8x8xf32> to vector<8xf32>
    %287 = vector.shape_cast %286 : vector<8xf32> to vector<8x1xf32>
    %288 = tpu.reciprocal %287 {approx = true} : vector<8x1xf32> -> vector<8x1xf32>
    %289 = vector.broadcast %288 : vector<8x1xf32> to vector<8x8xf32>
    %290 = arith.mulf %285, %289 : vector<8x8xf32>
    %291 = vector.extract_strided_slice %186 {offsets = [0, 16], sizes = [8, 4], strides = [1, 1]} : vector<8x32xf32> to vector<8x4xf32>
    %cst_79 = arith.constant dense<0.000000e+00> : vector<8x4xf32>
    %292 = tpu.matmul %290, %291, %cst_79 {dimension_numbers = #tpu.dot_dimension_numbers<[1], [0], [0], [1], [0, 0, 1, 1], [], []>} : vector<8x8xf32>, vector<8x4xf32>, vector<8x4xf32> -> vector<8x4xf32>
    %293 = vector.extract_strided_slice %184 {offsets = [0, 20], sizes = [8, 4], strides = [1, 1]} : vector<8x32xf32> to vector<8x4xf32>
    %294 = vector.extract_strided_slice %185 {offsets = [0, 20], sizes = [8, 4], strides = [1, 1]} : vector<8x32xf32> to vector<8x4xf32>
    %295 = tpu.transpose %294, [1, 0] : vector<8x4xf32> -> vector<4x8xf32>
    %cst_80 = arith.constant dense<0.000000e+00> : vector<8x8xf32>
    %296 = tpu.matmul %293, %295, %cst_80 {dimension_numbers = #tpu.dot_dimension_numbers<[1], [0], [0], [1], [0, 0, 1, 1], [], []>} : vector<8x4xf32>, vector<4x8xf32>, vector<8x8xf32> -> vector<8x8xf32>
    %cst_81 = arith.constant 5.000000e-01 : f32
    %297 = vector.broadcast %cst_81 : f32 to vector<8x8xf32>
    %298 = arith.mulf %296, %297 : vector<8x8xf32>
    %299 = vector.broadcast %192 : vector<1x8xf32> to vector<8x8xf32>
    %300 = arith.addf %298, %299 : vector<8x8xf32>
    %cst_82 = arith.constant dense<0xFF800000> : vector<8xf32>
    %301 = vector.multi_reduction <maximumf>, %300, %cst_82 [1] : vector<8x8xf32> to vector<8xf32>
    %302 = vector.shape_cast %301 : vector<8xf32> to vector<8x1xf32>
    %303 = vector.broadcast %302 : vector<8x1xf32> to vector<8x8xf32>
    %304 = arith.subf %300, %303 : vector<8x8xf32>
    %305 = math.exp %304 : vector<8x8xf32>
    %cst_83 = arith.constant dense<0.000000e+00> : vector<8xf32>
    %306 = vector.multi_reduction <add>, %305, %cst_83 [1] : vector<8x8xf32> to vector<8xf32>
    %307 = vector.shape_cast %306 : vector<8xf32> to vector<8x1xf32>
    %308 = tpu.reciprocal %307 {approx = true} : vector<8x1xf32> -> vector<8x1xf32>
    %309 = vector.broadcast %308 : vector<8x1xf32> to vector<8x8xf32>
    %310 = arith.mulf %305, %309 : vector<8x8xf32>
    %311 = vector.extract_strided_slice %186 {offsets = [0, 20], sizes = [8, 4], strides = [1, 1]} : vector<8x32xf32> to vector<8x4xf32>
    %cst_84 = arith.constant dense<0.000000e+00> : vector<8x4xf32>
    %312 = tpu.matmul %310, %311, %cst_84 {dimension_numbers = #tpu.dot_dimension_numbers<[1], [0], [0], [1], [0, 0, 1, 1], [], []>} : vector<8x8xf32>, vector<8x4xf32>, vector<8x4xf32> -> vector<8x4xf32>
    %313 = vector.extract_strided_slice %184 {offsets = [0, 24], sizes = [8, 4], strides = [1, 1]} : vector<8x32xf32> to vector<8x4xf32>
    %314 = vector.extract_strided_slice %185 {offsets = [0, 24], sizes = [8, 4], strides = [1, 1]} : vector<8x32xf32> to vector<8x4xf32>
    %315 = tpu.transpose %314, [1, 0] : vector<8x4xf32> -> vector<4x8xf32>
    %cst_85 = arith.constant dense<0.000000e+00> : vector<8x8xf32>
    %316 = tpu.matmul %313, %315, %cst_85 {dimension_numbers = #tpu.dot_dimension_numbers<[1], [0], [0], [1], [0, 0, 1, 1], [], []>} : vector<8x4xf32>, vector<4x8xf32>, vector<8x8xf32> -> vector<8x8xf32>
    %cst_86 = arith.constant 5.000000e-01 : f32
    %317 = vector.broadcast %cst_86 : f32 to vector<8x8xf32>
    %318 = arith.mulf %316, %317 : vector<8x8xf32>
    %319 = vector.broadcast %192 : vector<1x8xf32> to vector<8x8xf32>
    %320 = arith.addf %318, %319 : vector<8x8xf32>
    %cst_87 = arith.constant dense<0xFF800000> : vector<8xf32>
    %321 = vector.multi_reduction <maximumf>, %320, %cst_87 [1] : vector<8x8xf32> to vector<8xf32>
    %322 = vector.shape_cast %321 : vector<8xf32> to vector<8x1xf32>
    %323 = vector.broadcast %322 : vector<8x1xf32> to vector<8x8xf32>
    %324 = arith.subf %320, %323 : vector<8x8xf32>
    %325 = math.exp %324 : vector<8x8xf32>
    %cst_88 = arith.constant dense<0.000000e+00> : vector<8xf32>
    %326 = vector.multi_reduction <add>, %325, %cst_88 [1] : vector<8x8xf32> to vector<8xf32>
    %327 = vector.shape_cast %326 : vector<8xf32> to vector<8x1xf32>
    %328 = tpu.reciprocal %327 {approx = true} : vector<8x1xf32> -> vector<8x1xf32>
    %329 = vector.broadcast %328 : vector<8x1xf32> to vector<8x8xf32>
    %330 = arith.mulf %325, %329 : vector<8x8xf32>
    %331 = vector.extract_strided_slice %186 {offsets = [0, 24], sizes = [8, 4], strides = [1, 1]} : vector<8x32xf32> to vector<8x4xf32>
    %cst_89 = arith.constant dense<0.000000e+00> : vector<8x4xf32>
    %332 = tpu.matmul %330, %331, %cst_89 {dimension_numbers = #tpu.dot_dimension_numbers<[1], [0], [0], [1], [0, 0, 1, 1], [], []>} : vector<8x8xf32>, vector<8x4xf32>, vector<8x4xf32> -> vector<8x4xf32>
    %333 = vector.extract_strided_slice %184 {offsets = [0, 28], sizes = [8, 4], strides = [1, 1]} : vector<8x32xf32> to vector<8x4xf32>
    %334 = vector.extract_strided_slice %185 {offsets = [0, 28], sizes = [8, 4], strides = [1, 1]} : vector<8x32xf32> to vector<8x4xf32>
    %335 = tpu.transpose %334, [1, 0] : vector<8x4xf32> -> vector<4x8xf32>
    %cst_90 = arith.constant dense<0.000000e+00> : vector<8x8xf32>
    %336 = tpu.matmul %333, %335, %cst_90 {dimension_numbers = #tpu.dot_dimension_numbers<[1], [0], [0], [1], [0, 0, 1, 1], [], []>} : vector<8x4xf32>, vector<4x8xf32>, vector<8x8xf32> -> vector<8x8xf32>
    %cst_91 = arith.constant 5.000000e-01 : f32
    %337 = vector.broadcast %cst_91 : f32 to vector<8x8xf32>
    %338 = arith.mulf %336, %337 : vector<8x8xf32>
    %339 = vector.broadcast %192 : vector<1x8xf32> to vector<8x8xf32>
    %340 = arith.addf %338, %339 : vector<8x8xf32>
    %cst_92 = arith.constant dense<0xFF800000> : vector<8xf32>
    %341 = vector.multi_reduction <maximumf>, %340, %cst_92 [1] : vector<8x8xf32> to vector<8xf32>
    %342 = vector.shape_cast %341 : vector<8xf32> to vector<8x1xf32>
    %343 = vector.broadcast %342 : vector<8x1xf32> to vector<8x8xf32>
    %344 = arith.subf %340, %343 : vector<8x8xf32>
    %345 = math.exp %344 : vector<8x8xf32>
    %cst_93 = arith.constant dense<0.000000e+00> : vector<8xf32>
    %346 = vector.multi_reduction <add>, %345, %cst_93 [1] : vector<8x8xf32> to vector<8xf32>
    %347 = vector.shape_cast %346 : vector<8xf32> to vector<8x1xf32>
    %348 = tpu.reciprocal %347 {approx = true} : vector<8x1xf32> -> vector<8x1xf32>
    %349 = vector.broadcast %348 : vector<8x1xf32> to vector<8x8xf32>
    %350 = arith.mulf %345, %349 : vector<8x8xf32>
    %351 = vector.extract_strided_slice %186 {offsets = [0, 28], sizes = [8, 4], strides = [1, 1]} : vector<8x32xf32> to vector<8x4xf32>
    %cst_94 = arith.constant dense<0.000000e+00> : vector<8x4xf32>
    %352 = tpu.matmul %350, %351, %cst_94 {dimension_numbers = #tpu.dot_dimension_numbers<[1], [0], [0], [1], [0, 0, 1, 1], [], []>} : vector<8x8xf32>, vector<8x4xf32>, vector<8x4xf32> -> vector<8x4xf32>
    %353 = tpu.concatenate %212, %232, %252, %272, %292, %312, %332, %352 in 1 : vector<8x4xf32>, vector<8x4xf32>, vector<8x4xf32>, vector<8x4xf32>, vector<8x4xf32>, vector<8x4xf32>, vector<8x4xf32>, vector<8x4xf32> -> vector<8x32xf32>
    %354 = tpu.concatenate %183, %353 in 0 : vector<8x32xf32>, vector<8x32xf32> -> vector<16x32xf32>
    %c0_95 = arith.constant 0 : index
    %c0_96 = arith.constant 0 : index
    %355 = vector.load %arg4[%c0_95, %c0_96] : memref<32x32xf32, #tpu.memory_space<vmem>>, vector<32x32xf32>
    %cst_97 = arith.constant dense<0.000000e+00> : vector<16x32xf32>
    %356 = tpu.matmul %354, %355, %cst_97 {dimension_numbers = #tpu.dot_dimension_numbers<[1], [0], [0], [1], [0, 0, 1, 1], [], []>} : vector<16x32xf32>, vector<32x32xf32>, vector<16x32xf32> -> vector<16x32xf32>
    %357 = vector.broadcast %3 : vector<1x32xf32> to vector<16x32xf32>
    %358 = arith.addf %356, %357 : vector<16x32xf32>
    %359 = arith.addf %0, %358 : vector<16x32xf32>
    %cst_98 = arith.constant dense<0.000000e+00> : vector<16xf32>
    %360 = vector.multi_reduction <add>, %359, %cst_98 [1] : vector<16x32xf32> to vector<16xf32>
    %361 = vector.shape_cast %360 : vector<16xf32> to vector<16x1xf32>
    %cst_99 = arith.constant 3.200000e+01 : f32
    %362 = vector.broadcast %cst_99 : f32 to vector<16x1xf32>
    %363 = arith.divf %361, %362 : vector<16x1xf32>
    %364 = vector.broadcast %363 : vector<16x1xf32> to vector<16x32xf32>
    %365 = arith.subf %359, %364 : vector<16x32xf32>
    %366 = arith.mulf %365, %365 : vector<16x32xf32>
    %cst_100 = arith.constant dense<0.000000e+00> : vector<16xf32>
    %367 = vector.multi_reduction <add>, %366, %cst_100 [1] : vector<16x32xf32> to vector<16xf32>
    %368 = vector.shape_cast %367 : vector<16xf32> to vector<16x1xf32>
    %cst_101 = arith.constant 0.0322580636 : f32
    %369 = vector.broadcast %cst_101 : f32 to vector<16x1xf32>
    %370 = arith.mulf %368, %369 : vector<16x1xf32>
    %371 = math.sqrt %370 : vector<16x1xf32>
    %cst_102 = arith.constant 9.99999997E-7 : f32
    %372 = vector.broadcast %cst_102 : f32 to vector<16x1xf32>
    %373 = arith.addf %371, %372 : vector<16x1xf32>
    %374 = tpu.reciprocal %373 {approx = true} : vector<16x1xf32> -> vector<16x1xf32>
    %375 = vector.broadcast %363 : vector<16x1xf32> to vector<16x32xf32>
    %376 = arith.subf %359, %375 : vector<16x32xf32>
    %377 = vector.broadcast %4 : vector<1x32xf32> to vector<16x32xf32>
    %378 = arith.mulf %377, %376 : vector<16x32xf32>
    %379 = vector.broadcast %374 : vector<16x1xf32> to vector<16x32xf32>
    %380 = arith.mulf %378, %379 : vector<16x32xf32>
    %381 = vector.broadcast %5 : vector<1x32xf32> to vector<16x32xf32>
    %382 = arith.addf %380, %381 : vector<16x32xf32>
    %c0_103 = arith.constant 0 : index
    %c0_104 = arith.constant 0 : index
    %383 = vector.load %arg6[%c0_103, %c0_104] : memref<32x64xf32, #tpu.memory_space<vmem>>, vector<32x64xf32>
    %cst_105 = arith.constant dense<0.000000e+00> : vector<16x64xf32>
    %384 = tpu.matmul %382, %383, %cst_105 {dimension_numbers = #tpu.dot_dimension_numbers<[1], [0], [0], [1], [0, 0, 1, 1], [], []>} : vector<16x32xf32>, vector<32x64xf32>, vector<16x64xf32> -> vector<16x64xf32>
    %c0_106 = arith.constant 0 : index
    %c0_107 = arith.constant 0 : index
    %385 = vector.load %arg7[%c0_106, %c0_107] : memref<1x64xf32, #tpu.memory_space<vmem>>, vector<1x64xf32>
    %386 = vector.broadcast %385 : vector<1x64xf32> to vector<16x64xf32>
    %387 = arith.addf %384, %386 : vector<16x64xf32>
    %cst_108 = arith.constant 0.000000e+00 : f32
    %388 = vector.broadcast %cst_108 : f32 to vector<16x64xf32>
    %389 = arith.maximumf %387, %388 : vector<16x64xf32>
    %c0_109 = arith.constant 0 : index
    %c0_110 = arith.constant 0 : index
    %390 = vector.load %arg8[%c0_109, %c0_110] : memref<64x32xf32, #tpu.memory_space<vmem>>, vector<64x32xf32>
    %cst_111 = arith.constant dense<0.000000e+00> : vector<16x32xf32>
    %391 = tpu.matmul %389, %390, %cst_111 {dimension_numbers = #tpu.dot_dimension_numbers<[1], [0], [0], [1], [0, 0, 1, 1], [], []>} : vector<16x64xf32>, vector<64x32xf32>, vector<16x32xf32> -> vector<16x32xf32>
    %392 = vector.broadcast %6 : vector<1x32xf32> to vector<16x32xf32>
    %393 = arith.addf %391, %392 : vector<16x32xf32>
    %394 = arith.addf %382, %393 : vector<16x32xf32>
    %cst_112 = arith.constant dense<0.000000e+00> : vector<16xf32>
    %395 = vector.multi_reduction <add>, %394, %cst_112 [1] : vector<16x32xf32> to vector<16xf32>
    %396 = vector.shape_cast %395 : vector<16xf32> to vector<16x1xf32>
    %cst_113 = arith.constant 3.200000e+01 : f32
    %397 = vector.broadcast %cst_113 : f32 to vector<16x1xf32>
    %398 = arith.divf %396, %397 : vector<16x1xf32>
    %399 = vector.broadcast %398 : vector<16x1xf32> to vector<16x32xf32>
    %400 = arith.subf %394, %399 : vector<16x32xf32>
    %401 = arith.mulf %400, %400 : vector<16x32xf32>
    %cst_114 = arith.constant dense<0.000000e+00> : vector<16xf32>
    %402 = vector.multi_reduction <add>, %401, %cst_114 [1] : vector<16x32xf32> to vector<16xf32>
    %403 = vector.shape_cast %402 : vector<16xf32> to vector<16x1xf32>
    %cst_115 = arith.constant 0.0322580636 : f32
    %404 = vector.broadcast %cst_115 : f32 to vector<16x1xf32>
    %405 = arith.mulf %403, %404 : vector<16x1xf32>
    %406 = math.sqrt %405 : vector<16x1xf32>
    %cst_116 = arith.constant 9.99999997E-7 : f32
    %407 = vector.broadcast %cst_116 : f32 to vector<16x1xf32>
    %408 = arith.addf %406, %407 : vector<16x1xf32>
    %409 = tpu.reciprocal %408 {approx = true} : vector<16x1xf32> -> vector<16x1xf32>
    %410 = vector.broadcast %398 : vector<16x1xf32> to vector<16x32xf32>
    %411 = arith.subf %394, %410 : vector<16x32xf32>
    %412 = vector.broadcast %7 : vector<1x32xf32> to vector<16x32xf32>
    %413 = arith.mulf %412, %411 : vector<16x32xf32>
    %414 = vector.broadcast %409 : vector<16x1xf32> to vector<16x32xf32>
    %415 = arith.mulf %413, %414 : vector<16x32xf32>
    %416 = vector.broadcast %8 : vector<1x32xf32> to vector<16x32xf32>
    %417 = arith.addf %415, %416 : vector<16x32xf32>
    %418 = vector.extract_strided_slice %417 {offsets = [0, 0], sizes = [8, 32], strides = [1, 1]} : vector<16x32xf32> to vector<8x32xf32>
    %cst_117 = arith.constant dense<0.000000e+00> : vector<32xf32>
    %419 = vector.multi_reduction <add>, %418, %cst_117 [0] : vector<8x32xf32> to vector<32xf32>
    %420 = vector.shape_cast %419 : vector<32xf32> to vector<1x32xf32>
    %cst_118 = arith.constant 8.000000e+00 : f32
    %421 = vector.broadcast %cst_118 : f32 to vector<1x32xf32>
    %422 = arith.divf %420, %421 : vector<1x32xf32>
    %423 = vector.extract_strided_slice %417 {offsets = [8, 0], sizes = [8, 32], strides = [1, 1]} : vector<16x32xf32> to vector<8x32xf32>
    %cst_119 = arith.constant dense<0.000000e+00> : vector<32xf32>
    %424 = vector.multi_reduction <add>, %423, %cst_119 [0] : vector<8x32xf32> to vector<32xf32>
    %425 = vector.shape_cast %424 : vector<32xf32> to vector<1x32xf32>
    %cst_120 = arith.constant 8.000000e+00 : f32
    %426 = vector.broadcast %cst_120 : f32 to vector<1x32xf32>
    %427 = arith.divf %425, %426 : vector<1x32xf32>
    %428 = tpu.concatenate %422, %427 in 0 : vector<1x32xf32>, vector<1x32xf32> -> vector<2x32xf32>
    %c0_121 = arith.constant 0 : index
    %c0_122 = arith.constant 0 : index
    %429 = vector.load %arg9[%c0_121, %c0_122] : memref<32x256xf32, #tpu.memory_space<vmem>>, vector<32x256xf32>
    %cst_123 = arith.constant dense<0.000000e+00> : vector<2x256xf32>
    %430 = tpu.matmul %428, %429, %cst_123 {dimension_numbers = #tpu.dot_dimension_numbers<[1], [0], [0], [1], [0, 0, 1, 1], [], []>} : vector<2x32xf32>, vector<32x256xf32>, vector<2x256xf32> -> vector<2x256xf32>
    %c0_124 = arith.constant 0 : index
    %c0_125 = arith.constant 0 : index
    %431 = vector.load %arg10[%c0_124, %c0_125] : memref<1x256xf32, #tpu.memory_space<vmem>>, vector<1x256xf32>
    %432 = vector.broadcast %431 : vector<1x256xf32> to vector<2x256xf32>
    %433 = arith.addf %430, %432 : vector<2x256xf32>
    %c0_126 = arith.constant 0 : index
    %c0_127 = arith.constant 0 : index
    %434 = vector.load %arg11[%c0_126, %c0_127] : memref<256x4xf32, #tpu.memory_space<vmem>>, vector<256x4xf32>
    %cst_128 = arith.constant dense<0.000000e+00> : vector<2x4xf32>
    %435 = tpu.matmul %433, %434, %cst_128 {dimension_numbers = #tpu.dot_dimension_numbers<[1], [0], [0], [1], [0, 0, 1, 1], [], []>} : vector<2x256xf32>, vector<256x4xf32>, vector<2x4xf32> -> vector<2x4xf32>
    %c0_129 = arith.constant 0 : index
    %c0_130 = arith.constant 0 : index
    %436 = vector.load %arg12[%c0_129, %c0_130] : memref<1x4xf32, #tpu.memory_space<vmem>>, vector<1x4xf32>
    %437 = vector.broadcast %436 : vector<1x4xf32> to vector<2x4xf32>
    %438 = arith.addf %435, %437 : vector<2x4xf32>
    %c0_131 = arith.constant 0 : index
    %c0_132 = arith.constant 0 : index
    %439 = vector.load %arg13[%c0_131, %c0_132] : memref<2x4xf32, #tpu.memory_space<vmem>>, vector<2x4xf32>
    tpu.vector_store %arg13[%c0_131, %c0_132], %438 {strides = array<i32>} : memref<2x4xf32, #tpu.memory_space<vmem>>, vector<2x4xf32>,
    return
  }
}

</mosaic_0001>

<llo_original>
// kernel: tpu_custom_call.1
$region0: #{tpu_custom_call.1}
  #allocation0 [shape = 'u32[]', space=smem, size = 0x4, offset = 0x4, fixed_abs, tag = 'smem constant byte address 0x4 - core index']
  #allocation1 [shape = 'u32[72,128]{1,0:T(1,128)}', space=vmem, size = 0x9000, scoped, tag = 'internal scratch']
  %s0 = inlined_call_operand.vmem [shape: f32[16,32], index: 0, kind: input, shape index: {}]
  %s1 = inlined_call_operand.vmem [shape: f32[2,8], index: 1, kind: input, shape index: {}]
  %s2 = inlined_call_operand.vmem [shape: f32[32,96], index: 2, kind: input, shape index: {}]
  %s3 = inlined_call_operand.vmem [shape: f32[1,96], index: 3, kind: input, shape index: {}]
  %s4 = inlined_call_operand.vmem [shape: f32[32,32], index: 4, kind: input, shape index: {}]
  %s5 = inlined_call_operand.vmem [shape: f32[6,32], index: 5, kind: input, shape index: {}]
  %s6 = inlined_call_operand.vmem [shape: f32[32,64], index: 6, kind: input, shape index: {}]
  %s7 = inlined_call_operand.vmem [shape: f32[1,64], index: 7, kind: input, shape index: {}]
  %s8 = inlined_call_operand.vmem [shape: f32[64,32], index: 8, kind: input, shape index: {}]
  %s9 = inlined_call_operand.vmem [shape: f32[32,256], index: 9, kind: input, shape index: {}]
  %s10 = inlined_call_operand.vmem [shape: f32[1,256], index: 10, kind: input, shape index: {}]
  %s11 = inlined_call_operand.vmem [shape: f32[256,4], index: 11, kind: input, shape index: {}]
  %s12 = inlined_call_operand.vmem [shape: f32[1,4], index: 12, kind: input, shape index: {}]
  %s13 = inlined_call_operand.hbm [shape: f32[2,4], index: 13, kind: output, shape index: {}]
  %s14 = sld [smem:[#allocation0]]
  $region62: #{tpu_custom_call.1} parent=0
    _
  %s16 = ssub.s32 1, %s14
  %s17 = scalar_select 0, %s16, %s14
  $region1: #{tpu_custom_call.1} parent=0
    #allocation2 [shape = 'u8[1024]{0}', space=vmem, size = 0x400, scoped, tag = 'output window, operand 0, single buffered']
    #allocation3 [shape = 's32[1]{0}', space=sflag, size = 0x4, scoped, tag = 'scoped memory for tpu_custom_call.1']
    %18 = vsyncpa [#allocation3], 0
    // Predicated region
    $region2: #{tpu_custom_call.1} parent=1 // pred_check
      _
    $region3: #{tpu_custom_call.1} parent=1 // pred_check_branch
      %20 = sbr.rel (0) target = $region5
    $region4: #{tpu_custom_call.1} parent=1 // pred_region
      _
    $region5: #{tpu_custom_call.1} parent=1 // pred_fallthru
      _
    // Predicated region
    $region6: #{tpu_custom_call.1} parent=1 // pred_check
      _
    $region7: #{tpu_custom_call.1} parent=1 // pred_check_branch
      %22 = sbr.rel (0) target = $region9
    $region8: #{tpu_custom_call.1} parent=1 // pred_region
      _
    $region9: #{tpu_custom_call.1} parent=1 // pred_fallthru
      _
    // Predicated region
    $region10: #{tpu_custom_call.1} parent=1 // pred_check
      _
    $region11: #{tpu_custom_call.1} parent=1 // pred_check_branch
      %24 = sbr.rel (0) target = $region13
    $region12: #{tpu_custom_call.1} parent=1 // pred_region
      _
    $region13: #{tpu_custom_call.1} parent=1 // pred_fallthru
      _
    // Predicated region
    $region14: #{tpu_custom_call.1} parent=1 // pred_check
      _
    $region15: #{tpu_custom_call.1} parent=1 // pred_check_branch
      %26 = sbr.rel (0) target = $region17
    $region16: #{tpu_custom_call.1} parent=1 // pred_region
      _
    $region17: #{tpu_custom_call.1} parent=1 // pred_fallthru
      _
    // Predicated region
    $region18: #{tpu_custom_call.1} parent=1 // pred_check
      _
    $region19: #{tpu_custom_call.1} parent=1 // pred_check_branch
      %28 = sbr.rel (0) target = $region21
    $region20: #{tpu_custom_call.1} parent=1 // pred_region
      _
    $region21: #{tpu_custom_call.1} parent=1 // pred_fallthru
      _
    // Predicated region
    $region22: #{tpu_custom_call.1} parent=1 // pred_check
      _
    $region23: #{tpu_custom_call.1} parent=1 // pred_check_branch
      %30 = sbr.rel (0) target = $region25
    $region24: #{tpu_custom_call.1} parent=1 // pred_region
      _
    $region25: #{tpu_custom_call.1} parent=1 // pred_fallthru
      _
    // Predicated region
    $region26: #{tpu_custom_call.1} parent=1 // pred_check
      _
    $region27: #{tpu_custom_call.1} parent=1 // pred_check_branch
      %32 = sbr.rel (0) target = $region29
    $region28: #{tpu_custom_call.1} parent=1 // pred_region
      _
    $region29: #{tpu_custom_call.1} parent=1 // pred_fallthru
      _
    // Predicated region
    $region30: #{tpu_custom_call.1} parent=1 // pred_check
      _
    $region31: #{tpu_custom_call.1} parent=1 // pred_check_branch
      %34 = sbr.rel (0) target = $region33
    $region32: #{tpu_custom_call.1} parent=1 // pred_region
      _
    $region33: #{tpu_custom_call.1} parent=1 // pred_fallthru
      _
    // Predicated region
    $region34: #{tpu_custom_call.1} parent=1 // pred_check
      _
    $region35: #{tpu_custom_call.1} parent=1 // pred_check_branch
      %36 = sbr.rel (0) target = $region37
    $region36: #{tpu_custom_call.1} parent=1 // pred_region
      _
    $region37: #{tpu_custom_call.1} parent=1 // pred_fallthru
      _
    // Predicated region
    $region38: #{tpu_custom_call.1} parent=1 // pred_check
      _
    $region39: #{tpu_custom_call.1} parent=1 // pred_check_branch
      %38 = sbr.rel (0) target = $region41
    $region40: #{tpu_custom_call.1} parent=1 // pred_region
      _
    $region41: #{tpu_custom_call.1} parent=1 // pred_fallthru
      _
    // Predicated region
    $region42: #{tpu_custom_call.1} parent=1 // pred_check
      _
    $region43: #{tpu_custom_call.1} parent=1 // pred_check_branch
      %40 = sbr.rel (0) target = $region45
    $region44: #{tpu_custom_call.1} parent=1 // pred_region
      _
    $region45: #{tpu_custom_call.1} parent=1 // pred_fallthru
      _
    // Predicated region
    $region46: #{tpu_custom_call.1} parent=1 // pred_check
      _
    $region47: #{tpu_custom_call.1} parent=1 // pred_check_branch
      %42 = sbr.rel (0) target = $region49
    $region48: #{tpu_custom_call.1} parent=1 // pred_region
      _
    $region49: #{tpu_custom_call.1} parent=1 // pred_fallthru
      _
    // Predicated region
    $region50: #{tpu_custom_call.1} parent=1 // pred_check
      _
    $region51: #{tpu_custom_call.1} parent=1 // pred_check_branch
      %44 = sbr.rel (0) target = $region53
    $region52: #{tpu_custom_call.1} parent=1 // pred_region
      _
    $region53: #{tpu_custom_call.1} parent=1 // pred_fallthru
      _
    %v45 = vld [vmem:[%s0] sm:$0xff]
    %v46 = vld [vmem:[%s0 + $0x8] sm:$0xff]
    %v47 = vld [vmem:[%s1] sm:$0x3]
    %v48 = vld [vmem:[%s5] sm:$0x3f]
    %v49 = vld [vmem:[%s2] sm:$0xff]
    %v50 = vld [vmem:[%s2 + $0x8] sm:$0xff]
    %v51 = vld [vmem:[%s2 + $0x10] sm:$0xff]
    %v52 = vld [vmem:[%s2 + $0x18] sm:$0xff]
    %v53 = vld [vmem:[%s3] sm:$0x1]
    %v55 = vperm.slane %v53, 0
    %vm57 = vcmask 261120
    %v59 = vsel %vm57, %v45, 0
    %v62 = vsel %vm57, %v46, 0
    %64 = vmatpush.msra.mxu0 0.0
    %65 = vmatpush.msra.mxu0 0.0
    %66 = vmatpush.msra.mxu0 0.0
    %67 = vmatpush.msra.mxu0 0.0
    %68 = vmatpush.msra.mxu0 0.0
    %69 = vmatpush.msra.mxu0 0.0
    %70 = vmatpush.msra.mxu0 0.0
    %71 = vmatpush.msra.mxu0 0.0
    %72 = vmatpush.msra.mxu0 0.0
    %73 = vmatpush.msra.mxu0 0.0
    %74 = vmatpush.msra.mxu0 0.0
    %75 = vmatpush.msra.mxu0 0.0
    %76 = vmatpush.msra.mxu0 %v52
    %77 = vmatpush.msra.mxu0 %v51
    %78 = vmatpush.msra.mxu0 %v50
    %79 = vmatpush.msra.mxu0 %v49
    %80 = vmatmul.f32.gmra.mxu0 %v59
    %v81 = vpop.f32.mrf.mxu0
    %v82 = vadd.f32 %v55, %v81
    %83 = vmatmul.f32.gmra.mxu0 %v62
    %v84 = vpop.f32.mrf.mxu0
    %v85 = vadd.f32 %v55, %v84
    %86 = vdwg.mxu0
    %vm87 = vcmp.eq.f32.partialorder %v47, 0.0
    %v88 = vsel %vm87, -1e+09, 0.0
    %90 = vrot.lane.b32.xlu0 %v82, 96
    %v91 = vpop.permute.xlu0 %90
    %vm92 = vcmask 31744
    %v93 = vsel %vm92, %v82, 0
    %v95 = vsel %vm92, %v91, 0
    %97 = vmatpush.xpose.msra.mxu0 0.0
    %98 = vmatpush.xpose.msra.mxu0 0.0
    %99 = vmatpush.xpose.msra.mxu0 0.0
    %100 = vmatpush.xpose.msra.mxu0 0.0
    %101 = vmatpush.xpose.msra.mxu0 0.0
    %102 = vmatpush.xpose.msra.mxu0 0.0
    %103 = vmatpush.xpose.msra.mxu0 0.0
    %104 = vmatpush.xpose.msra.mxu0 0.0
    %105 = vmatpush.xpose.msra.mxu0 0.0
    %106 = vmatpush.xpose.msra.mxu0 0.0
    %107 = vmatpush.xpose.msra.mxu0 0.0
    %108 = vmatpush.xpose.msra.mxu0 0.0
    %109 = vmatpush.xpose.msra.mxu0 0.0
    %110 = vmatpush.xpose.msra.mxu0 0.0
    %111 = vmatpush.xpose.msra.mxu0 0.0
    %112 = vmatpush.xpose.msra.mxu0 %v95
    %113 = vmatmul.f32.gmra.mxu0 %v93
    %v114 = vpop.f32.mrf.mxu0
    %v115 = vadd.f32 0.0, %v114
    %116 = vdwg.mxu0
    %v117 = vmul.f32 %v115, 0.5
    %v118 = vperm.slane %v88, 0
    %v119 = vadd.f32 %v117, %v118
    %vm120 = vcmask 64512
    %v121 = vsel %vm120, %v119, -inf
    %122 = vmax.xlane.f32.xlu0 %v121
    %v123 = vpop.xlane.xlu0 %122
    %v124 = vsub.f32 %v119, %v123
    %v125 = vmul.f32 %v124, 1.442695
    %v126 = vpow.pop %v125
    %v127 = vsel %vm120, %v126, 0.0
    %128 = vadd.xlane.f32.xlu0 %v127
    %v129 = vpop.xlane.xlu0 %128
    %v130 = vrcp.pop %v129
    %v131 = vmul.f32 %v126, %v130
    %132 = vrot.lane.b32.xlu0 %v82, 64
    %v133 = vpop.permute.xlu0 %132
    %v136 = vsel %vm120, %v131, 0
    %138 = vmatpush.msra.mxu0 0.0
    %139 = vmatpush.msra.mxu0 0.0
    %140 = vmatpush.msra.mxu0 0.0
    %141 = vmatpush.msra.mxu0 0.0
    %142 = vmatpush.msra.mxu0 0.0
    %143 = vmatpush.msra.mxu0 0.0
    %144 = vmatpush.msra.mxu0 0.0
    %145 = vmatpush.msra.mxu0 0.0
    %146 = vmatpush.msra.mxu0 0.0
    %147 = vmatpush.msra.mxu0 0.0
    %148 = vmatpush.msra.mxu0 0.0
    %149 = vmatpush.msra.mxu0 0.0
    %150 = vmatpush.msra.mxu0 0.0
    %151 = vmatpush.msra.mxu0 0.0
    %152 = vmatpush.msra.mxu0 0.0
    %153 = vmatpush.msra.mxu0 %v133
    %154 = vmatmul.f32.gmra.mxu0 %v136
    %v155 = vpop.f32.mrf.mxu0
    %v156 = vadd.f32 0.0, %v155
    %157 = vdwg.mxu0
    %158 = vrot.lane.b32.xlu0 %v82, 124
    %v159 = vpop.permute.xlu0 %158
    %160 = vrot.lane.b32.xlu0 %v82, 92
    %v161 = vpop.permute.xlu0 %160
    %v162 = vsel %vm92, %v159, 0
    %v164 = vsel %vm92, %v161, 0
    %166 = vmatpush.xpose.msra.mxu0 0.0
    %167 = vmatpush.xpose.msra.mxu0 0.0
    %168 = vmatpush.xpose.msra.mxu0 0.0
    %169 = vmatpush.xpose.msra.mxu0 0.0
    %170 = vmatpush.xpose.msra.mxu0 0.0
    %171 = vmatpush.xpose.msra.mxu0 0.0
    %172 = vmatpush.xpose.msra.mxu0 0.0
    %173 = vmatpush.xpose.msra.mxu0 0.0
    %174 = vmatpush.xpose.msra.mxu0 0.0
    %175 = vmatpush.xpose.msra.mxu0 0.0
    %176 = vmatpush.xpose.msra.mxu0 0.0
    %177 = vmatpush.xpose.msra.mxu0 0.0
    %178 = vmatpush.xpose.msra.mxu0 0.0
    %179 = vmatpush.xpose.msra.mxu0 0.0
    %180 = vmatpush.xpose.msra.mxu0 0.0
    %181 = vmatpush.xpose.msra.mxu0 %v164
    %182 = vmatmul.f32.gmra.mxu0 %v162
    %v183 = vpop.f32.mrf.mxu0
    %v184 = vadd.f32 0.0, %v183
    %185 = vdwg.mxu0
    %v186 = vmul.f32 %v184, 0.5
    %v187 = vadd.f32 %v186, %v118
    %v188 = vsel %vm120, %v187, -inf
    %189 = vmax.xlane.f32.xlu0 %v188
    %v190 = vpop.xlane.xlu0 %189
    %v191 = vsub.f32 %v187, %v190
    %v192 = vmul.f32 %v191, 1.442695
    %v193 = vpow.pop %v192
    %v194 = vsel %vm120, %v193, 0.0
    %195 = vadd.xlane.f32.xlu0 %v194
    %v196 = vpop.xlane.xlu0 %195
    %v197 = vrcp.pop %v196
    %v198 = vmul.f32 %v193, %v197
    %199 = vrot.lane.b32.xlu0 %v82, 60
    %v200 = vpop.permute.xlu0 %199
    %v203 = vsel %vm120, %v198, 0
    %205 = vmatpush.msra.mxu0 0.0
    %206 = vmatpush.msra.mxu0 0.0
    %207 = vmatpush.msra.mxu0 0.0
    %208 = vmatpush.msra.mxu0 0.0
    %209 = vmatpush.msra.mxu0 0.0
    %210 = vmatpush.msra.mxu0 0.0
    %211 = vmatpush.msra.mxu0 0.0
    %212 = vmatpush.msra.mxu0 0.0
    %213 = vmatpush.msra.mxu0 0.0
    %214 = vmatpush.msra.mxu0 0.0
    %215 = vmatpush.msra.mxu0 0.0
    %216 = vmatpush.msra.mxu0 0.0
    %217 = vmatpush.msra.mxu0 0.0
    %218 = vmatpush.msra.mxu0 0.0
    %219 = vmatpush.msra.mxu0 0.0
    %220 = vmatpush.msra.mxu0 %v200
    %221 = vmatmul.f32.gmra.mxu0 %v203
    %v222 = vpop.f32.mrf.mxu0
    %v223 = vadd.f32 0.0, %v222
    %224 = vdwg.mxu0
    %225 = vrot.lane.b32.xlu0 %v82, 120
    %v226 = vpop.permute.xlu0 %225
    %227 = vrot.lane.b32.xlu0 %v82, 88
    %v228 = vpop.permute.xlu0 %227
    %v229 = vsel %vm92, %v226, 0
    %v231 = vsel %vm92, %v228, 0
    %233 = vmatpush.xpose.msra.mxu0 0.0
    %234 = vmatpush.xpose.msra.mxu0 0.0
    %235 = vmatpush.xpose.msra.mxu0 0.0
    %236 = vmatpush.xpose.msra.mxu0 0.0
    %237 = vmatpush.xpose.msra.mxu0 0.0
    %238 = vmatpush.xpose.msra.mxu0 0.0
    %239 = vmatpush.xpose.msra.mxu0 0.0
    %240 = vmatpush.xpose.msra.mxu0 0.0
    %241 = vmatpush.xpose.msra.mxu0 0.0
    %242 = vmatpush.xpose.msra.mxu0 0.0
    %243 = vmatpush.xpose.msra.mxu0 0.0
    %244 = vmatpush.xpose.msra.mxu0 0.0
    %245 = vmatpush.xpose.msra.mxu0 0.0
    %246 = vmatpush.xpose.msra.mxu0 0.0
    %247 = vmatpush.xpose.msra.mxu0 0.0
    %248 = vmatpush.xpose.msra.mxu0 %v231
    %249 = vmatmul.f32.gmra.mxu0 %v229
    %v250 = vpop.f32.mrf.mxu0
    %v251 = vadd.f32 0.0, %v250
    %252 = vdwg.mxu0
    %v253 = vmul.f32 %v251, 0.5
    %v254 = vadd.f32 %v253, %v118
    %v255 = vsel %vm120, %v254, -inf
    %256 = vmax.xlane.f32.xlu0 %v255
    %v257 = vpop.xlane.xlu0 %256
    %v258 = vsub.f32 %v254, %v257
    %v259 = vmul.f32 %v258, 1.442695
    %v260 = vpow.pop %v259
    %v261 = vsel %vm120, %v260, 0.0
    %262 = vadd.xlane.f32.xlu0 %v261
    %v263 = vpop.xlane.xlu0 %262
    %v264 = vrcp.pop %v263
    %v265 = vmul.f32 %v260, %v264
    %266 = vrot.lane.b32.xlu0 %v82, 56
    %v267 = vpop.permute.xlu0 %266
    %v270 = vsel %vm120, %v265, 0
    %272 = vmatpush.msra.mxu0 0.0
    %273 = vmatpush.msra.mxu0 0.0
    %274 = vmatpush.msra.mxu0 0.0
    %275 = vmatpush.msra.mxu0 0.0
    %276 = vmatpush.msra.mxu0 0.0
    %277 = vmatpush.msra.mxu0 0.0
    %278 = vmatpush.msra.mxu0 0.0
    %279 = vmatpush.msra.mxu0 0.0
    %280 = vmatpush.msra.mxu0 0.0
    %281 = vmatpush.msra.mxu0 0.0
    %282 = vmatpush.msra.mxu0 0.0
    %283 = vmatpush.msra.mxu0 0.0
    %284 = vmatpush.msra.mxu0 0.0
    %285 = vmatpush.msra.mxu0 0.0
    %286 = vmatpush.msra.mxu0 0.0
    %287 = vmatpush.msra.mxu0 %v267
    %288 = vmatmul.f32.gmra.mxu0 %v270
    %v289 = vpop.f32.mrf.mxu0
    %v290 = vadd.f32 0.0, %v289
    %291 = vdwg.mxu0
    %292 = vrot.lane.b32.xlu0 %v82, 116
    %v293 = vpop.permute.xlu0 %292
    %294 = vrot.lane.b32.xlu0 %v82, 84
    %v295 = vpop.permute.xlu0 %294
    %v296 = vsel %vm92, %v293, 0
    %v298 = vsel %vm92, %v295, 0
    %300 = vmatpush.xpose.msra.mxu0 0.0
    %301 = vmatpush.xpose.msra.mxu0 0.0
    %302 = vmatpush.xpose.msra.mxu0 0.0
    %303 = vmatpush.xpose.msra.mxu0 0.0
    %304 = vmatpush.xpose.msra.mxu0 0.0
    %305 = vmatpush.xpose.msra.mxu0 0.0
    %306 = vmatpush.xpose.msra.mxu0 0.0
    %307 = vmatpush.xpose.msra.mxu0 0.0
    %308 = vmatpush.xpose.msra.mxu0 0.0
    %309 = vmatpush.xpose.msra.mxu0 0.0
    %310 = vmatpush.xpose.msra.mxu0 0.0
    %311 = vmatpush.xpose.msra.mxu0 0.0
    %312 = vmatpush.xpose.msra.mxu0 0.0
    %313 = vmatpush.xpose.msra.mxu0 0.0
    %314 = vmatpush.xpose.msra.mxu0 0.0
    %315 = vmatpush.xpose.msra.mxu0 %v298
    %316 = vmatmul.f32.gmra.mxu0 %v296
    %v317 = vpop.f32.mrf.mxu0
    %v318 = vadd.f32 0.0, %v317
    %319 = vdwg.mxu0
    %v320 = vmul.f32 %v318, 0.5
    %v321 = vadd.f32 %v320, %v118
    %v322 = vsel %vm120, %v321, -inf
    %323 = vmax.xlane.f32.xlu0 %v322
    %v324 = vpop.xlane.xlu0 %323
    %v325 = vsub.f32 %v321, %v324
    %v326 = vmul.f32 %v325, 1.442695
    %v327 = vpow.pop %v326
    %v328 = vsel %vm120, %v327, 0.0
    %329 = vadd.xlane.f32.xlu0 %v328
    %v330 = vpop.xlane.xlu0 %329
    %v331 = vrcp.pop %v330
    %v332 = vmul.f32 %v327, %v331
    %333 = vrot.lane.b32.xlu0 %v82, 52
    %v334 = vpop.permute.xlu0 %333
    %v337 = vsel %vm120, %v332, 0
    %339 = vmatpush.msra.mxu0 0.0
    %340 = vmatpush.msra.mxu0 0.0
    %341 = vmatpush.msra.mxu0 0.0
    %342 = vmatpush.msra.mxu0 0.0
    %343 = vmatpush.msra.mxu0 0.0
    %344 = vmatpush.msra.mxu0 0.0
    %345 = vmatpush.msra.mxu0 0.0
    %346 = vmatpush.msra.mxu0 0.0
    %347 = vmatpush.msra.mxu0 0.0
    %348 = vmatpush.msra.mxu0 0.0
    %349 = vmatpush.msra.mxu0 0.0
    %350 = vmatpush.msra.mxu0 0.0
    %351 = vmatpush.msra.mxu0 0.0
    %352 = vmatpush.msra.mxu0 0.0
    %353 = vmatpush.msra.mxu0 0.0
    %354 = vmatpush.msra.mxu0 %v334
    %355 = vmatmul.f32.gmra.mxu0 %v337
    %v356 = vpop.f32.mrf.mxu0
    %v357 = vadd.f32 0.0, %v356
    %358 = vdwg.mxu0
    %359 = vrot.lane.b32.xlu0 %v82, 112
    %v360 = vpop.permute.xlu0 %359
    %361 = vrot.lane.b32.xlu0 %v82, 80
    %v362 = vpop.permute.xlu0 %361
    %v363 = vsel %vm92, %v360, 0
    %v365 = vsel %vm92, %v362, 0
    %367 = vmatpush.xpose.msra.mxu0 0.0
    %368 = vmatpush.xpose.msra.mxu0 0.0
    %369 = vmatpush.xpose.msra.mxu0 0.0
    %370 = vmatpush.xpose.msra.mxu0 0.0
    %371 = vmatpush.xpose.msra.mxu0 0.0
    %372 = vmatpush.xpose.msra.mxu0 0.0
    %373 = vmatpush.xpose.msra.mxu0 0.0
    %374 = vmatpush.xpose.msra.mxu0 0.0
    %375 = vmatpush.xpose.msra.mxu0 0.0
    %376 = vmatpush.xpose.msra.mxu0 0.0
    %377 = vmatpush.xpose.msra.mxu0 0.0
    %378 = vmatpush.xpose.msra.mxu0 0.0
    %379 = vmatpush.xpose.msra.mxu0 0.0
    %380 = vmatpush.xpose.msra.mxu0 0.0
    %381 = vmatpush.xpose.msra.mxu0 0.0
    %382 = vmatpush.xpose.msra.mxu0 %v365
    %383 = vmatmul.f32.gmra.mxu0 %v363
    %v384 = vpop.f32.mrf.mxu0
    %v385 = vadd.f32 0.0, %v384
    %386 = vdwg.mxu0
    %v387 = vmul.f32 %v385, 0.5
    %v388 = vadd.f32 %v387, %v118
    %v389 = vsel %vm120, %v388, -inf
    %390 = vmax.xlane.f32.xlu0 %v389
    %v391 = vpop.xlane.xlu0 %390
    %v392 = vsub.f32 %v388, %v391
    %v393 = vmul.f32 %v392, 1.442695
    %v394 = vpow.pop %v393
    %v395 = vsel %vm120, %v394, 0.0
    %396 = vadd.xlane.f32.xlu0 %v395
    %v397 = vpop.xlane.xlu0 %396
    %v398 = vrcp.pop %v397
    %v399 = vmul.f32 %v394, %v398
    %400 = vrot.lane.b32.xlu0 %v82, 48
    %v401 = vpop.permute.xlu0 %400
    %v404 = vsel %vm120, %v399, 0
    %406 = vmatpush.msra.mxu0 0.0
    %407 = vmatpush.msra.mxu0 0.0
    %408 = vmatpush.msra.mxu0 0.0
    %409 = vmatpush.msra.mxu0 0.0
    %410 = vmatpush.msra.mxu0 0.0
    %411 = vmatpush.msra.mxu0 0.0
    %412 = vmatpush.msra.mxu0 0.0
    %413 = vmatpush.msra.mxu0 0.0
    %414 = vmatpush.msra.mxu0 0.0
    %415 = vmatpush.msra.mxu0 0.0
    %416 = vmatpush.msra.mxu0 0.0
    %417 = vmatpush.msra.mxu0 0.0
    %418 = vmatpush.msra.mxu0 0.0
    %419 = vmatpush.msra.mxu0 0.0
    %420 = vmatpush.msra.mxu0 0.0
    %421 = vmatpush.msra.mxu0 %v401
    %422 = vmatmul.f32.gmra.mxu0 %v404
    %v423 = vpop.f32.mrf.mxu0
    %v424 = vadd.f32 0.0, %v423
    %425 = vdwg.mxu0
    %426 = vrot.lane.b32.xlu0 %v82, 108
    %v427 = vpop.permute.xlu0 %426
    %428 = vrot.lane.b32.xlu0 %v82, 76
    %v429 = vpop.permute.xlu0 %428
    %v430 = vsel %vm92, %v427, 0
    %v432 = vsel %vm92, %v429, 0
    %434 = vmatpush.xpose.msra.mxu0 0.0
    %435 = vmatpush.xpose.msra.mxu0 0.0
    %436 = vmatpush.xpose.msra.mxu0 0.0
    %437 = vmatpush.xpose.msra.mxu0 0.0
    %438 = vmatpush.xpose.msra.mxu0 0.0
    %439 = vmatpush.xpose.msra.mxu0 0.0
    %440 = vmatpush.xpose.msra.mxu0 0.0
    %441 = vmatpush.xpose.msra.mxu0 0.0
    %442 = vmatpush.xpose.msra.mxu0 0.0
    %443 = vmatpush.xpose.msra.mxu0 0.0
    %444 = vmatpush.xpose.msra.mxu0 0.0
    %445 = vmatpush.xpose.msra.mxu0 0.0
    %446 = vmatpush.xpose.msra.mxu0 0.0
    %447 = vmatpush.xpose.msra.mxu0 0.0
    %448 = vmatpush.xpose.msra.mxu0 0.0
    %449 = vmatpush.xpose.msra.mxu0 %v432
    %450 = vmatmul.f32.gmra.mxu0 %v430
    %v451 = vpop.f32.mrf.mxu0
    %v452 = vadd.f32 0.0, %v451
    %453 = vdwg.mxu0
    %v454 = vmul.f32 %v452, 0.5
    %v455 = vadd.f32 %v454, %v118
    %v456 = vsel %vm120, %v455, -inf
    %457 = vmax.xlane.f32.xlu0 %v456
    %v458 = vpop.xlane.xlu0 %457
    %v459 = vsub.f32 %v455, %v458
    %v460 = vmul.f32 %v459, 1.442695
    %v461 = vpow.pop %v460
    %v462 = vsel %vm120, %v461, 0.0
    %463 = vadd.xlane.f32.xlu0 %v462
    %v464 = vpop.xlane.xlu0 %463
    %v465 = vrcp.pop %v464
    %v466 = vmul.f32 %v461, %v465
    %467 = vrot.lane.b32.xlu0 %v82, 44
    %v468 = vpop.permute.xlu0 %467
    %v471 = vsel %vm120, %v466, 0
    %473 = vmatpush.msra.mxu0 0.0
    %474 = vmatpush.msra.mxu0 0.0
    %475 = vmatpush.msra.mxu0 0.0
    %476 = vmatpush.msra.mxu0 0.0
    %477 = vmatpush.msra.mxu0 0.0
    %478 = vmatpush.msra.mxu0 0.0
    %479 = vmatpush.msra.mxu0 0.0
    %480 = vmatpush.msra.mxu0 0.0
    %481 = vmatpush.msra.mxu0 0.0
    %482 = vmatpush.msra.mxu0 0.0
    %483 = vmatpush.msra.mxu0 0.0
    %484 = vmatpush.msra.mxu0 0.0
    %485 = vmatpush.msra.mxu0 0.0
    %486 = vmatpush.msra.mxu0 0.0
    %487 = vmatpush.msra.mxu0 0.0
    %488 = vmatpush.msra.mxu0 %v468
    %489 = vmatmul.f32.gmra.mxu0 %v471
    %v490 = vpop.f32.mrf.mxu0
    %v491 = vadd.f32 0.0, %v490
    %492 = vdwg.mxu0
    %493 = vrot.lane.b32.xlu0 %v82, 104
    %v494 = vpop.permute.xlu0 %493
    %495 = vrot.lane.b32.xlu0 %v82, 72
    %v496 = vpop.permute.xlu0 %495
    %v497 = vsel %vm92, %v494, 0
    %v499 = vsel %vm92, %v496, 0
    %501 = vmatpush.xpose.msra.mxu0 0.0
    %502 = vmatpush.xpose.msra.mxu0 0.0
    %503 = vmatpush.xpose.msra.mxu0 0.0
    %504 = vmatpush.xpose.msra.mxu0 0.0
    %505 = vmatpush.xpose.msra.mxu0 0.0
    %506 = vmatpush.xpose.msra.mxu0 0.0
    %507 = vmatpush.xpose.msra.mxu0 0.0
    %508 = vmatpush.xpose.msra.mxu0 0.0
    %509 = vmatpush.xpose.msra.mxu0 0.0
    %510 = vmatpush.xpose.msra.mxu0 0.0
    %511 = vmatpush.xpose.msra.mxu0 0.0
    %512 = vmatpush.xpose.msra.mxu0 0.0
    %513 = vmatpush.xpose.msra.mxu0 0.0
    %514 = vmatpush.xpose.msra.mxu0 0.0
    %515 = vmatpush.xpose.msra.mxu0 0.0
    %516 = vmatpush.xpose.msra.mxu0 %v499
    %517 = vmatmul.f32.gmra.mxu0 %v497
    %v518 = vpop.f32.mrf.mxu0
    %v519 = vadd.f32 0.0, %v518
    %520 = vdwg.mxu0
    %v521 = vmul.f32 %v519, 0.5
    %v522 = vadd.f32 %v521, %v118
    %v523 = vsel %vm120, %v522, -inf
    %524 = vmax.xlane.f32.xlu0 %v523
    %v525 = vpop.xlane.xlu0 %524
    %v526 = vsub.f32 %v522, %v525
    %v527 = vmul.f32 %v526, 1.442695
    %v528 = vpow.pop %v527
    %v529 = vsel %vm120, %v528, 0.0
    %530 = vadd.xlane.f32.xlu0 %v529
    %v531 = vpop.xlane.xlu0 %530
    %v532 = vrcp.pop %v531
    %v533 = vmul.f32 %v528, %v532
    %534 = vrot.lane.b32.xlu0 %v82, 40
    %v535 = vpop.permute.xlu0 %534
    %v538 = vsel %vm120, %v533, 0
    %540 = vmatpush.msra.mxu0 0.0
    %541 = vmatpush.msra.mxu0 0.0
    %542 = vmatpush.msra.mxu0 0.0
    %543 = vmatpush.msra.mxu0 0.0
    %544 = vmatpush.msra.mxu0 0.0
    %545 = vmatpush.msra.mxu0 0.0
    %546 = vmatpush.msra.mxu0 0.0
    %547 = vmatpush.msra.mxu0 0.0
    %548 = vmatpush.msra.mxu0 0.0
    %549 = vmatpush.msra.mxu0 0.0
    %550 = vmatpush.msra.mxu0 0.0
    %551 = vmatpush.msra.mxu0 0.0
    %552 = vmatpush.msra.mxu0 0.0
    %553 = vmatpush.msra.mxu0 0.0
    %554 = vmatpush.msra.mxu0 0.0
    %555 = vmatpush.msra.mxu0 %v535
    %556 = vmatmul.f32.gmra.mxu0 %v538
    %v557 = vpop.f32.mrf.mxu0
    %v558 = vadd.f32 0.0, %v557
    %559 = vdwg.mxu0
    %560 = vrot.lane.b32.xlu0 %v82, 100
    %v561 = vpop.permute.xlu0 %560
    %562 = vrot.lane.b32.xlu0 %v82, 68
    %v563 = vpop.permute.xlu0 %562
    %v564 = vsel %vm92, %v561, 0
    %v566 = vsel %vm92, %v563, 0
    %568 = vmatpush.xpose.msra.mxu0 0.0
    %569 = vmatpush.xpose.msra.mxu0 0.0
    %570 = vmatpush.xpose.msra.mxu0 0.0
    %571 = vmatpush.xpose.msra.mxu0 0.0
    %572 = vmatpush.xpose.msra.mxu0 0.0
    %573 = vmatpush.xpose.msra.mxu0 0.0
    %574 = vmatpush.xpose.msra.mxu0 0.0
    %575 = vmatpush.xpose.msra.mxu0 0.0
    %576 = vmatpush.xpose.msra.mxu0 0.0
    %577 = vmatpush.xpose.msra.mxu0 0.0
    %578 = vmatpush.xpose.msra.mxu0 0.0
    %579 = vmatpush.xpose.msra.mxu0 0.0
    %580 = vmatpush.xpose.msra.mxu0 0.0
    %581 = vmatpush.xpose.msra.mxu0 0.0
    %582 = vmatpush.xpose.msra.mxu0 0.0
    %583 = vmatpush.xpose.msra.mxu0 %v566
    %584 = vmatmul.f32.gmra.mxu0 %v564
    %v585 = vpop.f32.mrf.mxu0
    %v586 = vadd.f32 0.0, %v585
    %587 = vdwg.mxu0
    %v588 = vmul.f32 %v586, 0.5
    %v589 = vadd.f32 %v588, %v118
    %v590 = vsel %vm120, %v589, -inf
    %591 = vmax.xlane.f32.xlu0 %v590
    %v592 = vpop.xlane.xlu0 %591
    %v593 = vsub.f32 %v589, %v592
    %v594 = vmul.f32 %v593, 1.442695
    %v595 = vpow.pop %v594
    %v596 = vsel %vm120, %v595, 0.0
    %597 = vadd.xlane.f32.xlu0 %v596
    %v598 = vpop.xlane.xlu0 %597
    %v599 = vrcp.pop %v598
    %v600 = vmul.f32 %v595, %v599
    %601 = vrot.lane.b32.xlu0 %v82, 36
    %v602 = vpop.permute.xlu0 %601
    %v605 = vsel %vm120, %v600, 0
    %607 = vmatpush.msra.mxu0 0.0
    %608 = vmatpush.msra.mxu0 0.0
    %609 = vmatpush.msra.mxu0 0.0
    %610 = vmatpush.msra.mxu0 0.0
    %611 = vmatpush.msra.mxu0 0.0
    %612 = vmatpush.msra.mxu0 0.0
    %613 = vmatpush.msra.mxu0 0.0
    %614 = vmatpush.msra.mxu0 0.0
    %615 = vmatpush.msra.mxu0 0.0
    %616 = vmatpush.msra.mxu0 0.0
    %617 = vmatpush.msra.mxu0 0.0
    %618 = vmatpush.msra.mxu0 0.0
    %619 = vmatpush.msra.mxu0 0.0
    %620 = vmatpush.msra.mxu0 0.0
    %621 = vmatpush.msra.mxu0 0.0
    %622 = vmatpush.msra.mxu0 %v602
    %623 = vmatmul.f32.gmra.mxu0 %v605
    %v624 = vpop.f32.mrf.mxu0
    %v625 = vadd.f32 0.0, %v624
    %626 = vdwg.mxu0
    %628 = vrot.lane.b32.xlu0 %v223, 4
    %v629 = vpop.permute.xlu0 %628
    %632 = vrot.lane.b32.xlu0 %v290, 8
    %v633 = vpop.permute.xlu0 %632
    %636 = vrot.lane.b32.xlu0 %v357, 12
    %v637 = vpop.permute.xlu0 %636
    %640 = vrot.lane.b32.xlu0 %v424, 16
    %v641 = vpop.permute.xlu0 %640
    %644 = vrot.lane.b32.xlu0 %v491, 20
    %v645 = vpop.permute.xlu0 %644
    %648 = vrot.lane.b32.xlu0 %v558, 24
    %v649 = vpop.permute.xlu0 %648
    %652 = vrot.lane.b32.xlu0 %v625, 28
    %v653 = vpop.permute.xlu0 %652
    %v655 = vsel %vm92, %v156, %v629
    %v656 = vsel %vm120, %v655, %v633
    %vm657 = vcmask 97280
    %v658 = vsel %vm657, %v656, %v637
    %vm659 = vcmask 130048
    %v660 = vsel %vm659, %v658, %v641
    %vm661 = vcmask 162816
    %v662 = vsel %vm661, %v660, %v645
    %vm663 = vcmask 195584
    %v664 = vsel %vm663, %v662, %v649
    %vm665 = vcmask 228352
    %v666 = vsel %vm665, %v664, %v653
    %668 = vrot.lane.b32.xlu0 %v85, 96
    %v669 = vpop.permute.xlu0 %668
    %v670 = vsel %vm92, %v85, 0
    %v672 = vsel %vm92, %v669, 0
    %674 = vmatpush.xpose.msra.mxu0 0.0
    %675 = vmatpush.xpose.msra.mxu0 0.0
    %676 = vmatpush.xpose.msra.mxu0 0.0
    %677 = vmatpush.xpose.msra.mxu0 0.0
    %678 = vmatpush.xpose.msra.mxu0 0.0
    %679 = vmatpush.xpose.msra.mxu0 0.0
    %680 = vmatpush.xpose.msra.mxu0 0.0
    %681 = vmatpush.xpose.msra.mxu0 0.0
    %682 = vmatpush.xpose.msra.mxu0 0.0
    %683 = vmatpush.xpose.msra.mxu0 0.0
    %684 = vmatpush.xpose.msra.mxu0 0.0
    %685 = vmatpush.xpose.msra.mxu0 0.0
    %686 = vmatpush.xpose.msra.mxu0 0.0
    %687 = vmatpush.xpose.msra.mxu0 0.0
    %688 = vmatpush.xpose.msra.mxu0 0.0
    %689 = vmatpush.xpose.msra.mxu0 %v672
    %690 = vmatmul.f32.gmra.mxu0 %v670
    %v691 = vpop.f32.mrf.mxu0
    %v692 = vadd.f32 0.0, %v691
    %693 = vdwg.mxu0
    %v694 = vmul.f32 %v692, 0.5
    %v695 = vperm.slane %v88, 1
    %v696 = vadd.f32 %v694, %v695
    %v697 = vsel %vm120, %v696, -inf
    %698 = vmax.xlane.f32.xlu0 %v697
    %v699 = vpop.xlane.xlu0 %698
    %v700 = vsub.f32 %v696, %v699
    %v701 = vmul.f32 %v700, 1.442695
    %v702 = vpow.pop %v701
    %v703 = vsel %vm120, %v702, 0.0
    %704 = vadd.xlane.f32.xlu0 %v703
    %v705 = vpop.xlane.xlu0 %704
    %v706 = vrcp.pop %v705
    %v707 = vmul.f32 %v702, %v706
    %708 = vrot.lane.b32.xlu0 %v85, 64
    %v709 = vpop.permute.xlu0 %708
    %v712 = vsel %vm120, %v707, 0
    %714 = vmatpush.msra.mxu0 0.0
    %715 = vmatpush.msra.mxu0 0.0
    %716 = vmatpush.msra.mxu0 0.0
    %717 = vmatpush.msra.mxu0 0.0
    %718 = vmatpush.msra.mxu0 0.0
    %719 = vmatpush.msra.mxu0 0.0
    %720 = vmatpush.msra.mxu0 0.0
    %721 = vmatpush.msra.mxu0 0.0
    %722 = vmatpush.msra.mxu0 0.0
    %723 = vmatpush.msra.mxu0 0.0
    %724 = vmatpush.msra.mxu0 0.0
    %725 = vmatpush.msra.mxu0 0.0
    %726 = vmatpush.msra.mxu0 0.0
    %727 = vmatpush.msra.mxu0 0.0
    %728 = vmatpush.msra.mxu0 0.0
    %729 = vmatpush.msra.mxu0 %v709
    %730 = vmatmul.f32.gmra.mxu0 %v712
    %v731 = vpop.f32.mrf.mxu0
    %v732 = vadd.f32 0.0, %v731
    %733 = vdwg.mxu0
    %734 = vrot.lane.b32.xlu0 %v85, 124
    %v735 = vpop.permute.xlu0 %734
    %736 = vrot.lane.b32.xlu0 %v85, 92
    %v737 = vpop.permute.xlu0 %736
    %v738 = vsel %vm92, %v735, 0
    %v740 = vsel %vm92, %v737, 0
    %742 = vmatpush.xpose.msra.mxu0 0.0
    %743 = vmatpush.xpose.msra.mxu0 0.0
    %744 = vmatpush.xpose.msra.mxu0 0.0
    %745 = vmatpush.xpose.msra.mxu0 0.0
    %746 = vmatpush.xpose.msra.mxu0 0.0
    %747 = vmatpush.xpose.msra.mxu0 0.0
    %748 = vmatpush.xpose.msra.mxu0 0.0
    %749 = vmatpush.xpose.msra.mxu0 0.0
    %750 = vmatpush.xpose.msra.mxu0 0.0
    %751 = vmatpush.xpose.msra.mxu0 0.0
    %752 = vmatpush.xpose.msra.mxu0 0.0
    %753 = vmatpush.xpose.msra.mxu0 0.0
    %754 = vmatpush.xpose.msra.mxu0 0.0
    %755 = vmatpush.xpose.msra.mxu0 0.0
    %756 = vmatpush.xpose.msra.mxu0 0.0
    %757 = vmatpush.xpose.msra.mxu0 %v740
    %758 = vmatmul.f32.gmra.mxu0 %v738
    %v759 = vpop.f32.mrf.mxu0
    %v760 = vadd.f32 0.0, %v759
    %761 = vdwg.mxu0
    %v762 = vmul.f32 %v760, 0.5
    %v763 = vadd.f32 %v762, %v695
    %v764 = vsel %vm120, %v763, -inf
    %765 = vmax.xlane.f32.xlu0 %v764
    %v766 = vpop.xlane.xlu0 %765
    %v767 = vsub.f32 %v763, %v766
    %v768 = vmul.f32 %v767, 1.442695
    %v769 = vpow.pop %v768
    %v770 = vsel %vm120, %v769, 0.0
    %771 = vadd.xlane.f32.xlu0 %v770
    %v772 = vpop.xlane.xlu0 %771
    %v773 = vrcp.pop %v772
    %v774 = vmul.f32 %v769, %v773
    %775 = vrot.lane.b32.xlu0 %v85, 60
    %v776 = vpop.permute.xlu0 %775
    %v779 = vsel %vm120, %v774, 0
    %781 = vmatpush.msra.mxu0 0.0
    %782 = vmatpush.msra.mxu0 0.0
    %783 = vmatpush.msra.mxu0 0.0
    %784 = vmatpush.msra.mxu0 0.0
    %785 = vmatpush.msra.mxu0 0.0
    %786 = vmatpush.msra.mxu0 0.0
    %787 = vmatpush.msra.mxu0 0.0
    %788 = vmatpush.msra.mxu0 0.0
    %789 = vmatpush.msra.mxu0 0.0
    %790 = vmatpush.msra.mxu0 0.0
    %791 = vmatpush.msra.mxu0 0.0
    %792 = vmatpush.msra.mxu0 0.0
    %793 = vmatpush.msra.mxu0 0.0
    %794 = vmatpush.msra.mxu0 0.0
    %795 = vmatpush.msra.mxu0 0.0
    %796 = vmatpush.msra.mxu0 %v776
    %797 = vmatmul.f32.gmra.mxu0 %v779
    %v798 = vpop.f32.mrf.mxu0
    %v799 = vadd.f32 0.0, %v798
    %800 = vdwg.mxu0
    %801 = vrot.lane.b32.xlu0 %v85, 120
    %v802 = vpop.permute.xlu0 %801
    %803 = vrot.lane.b32.xlu0 %v85, 88
    %v804 = vpop.permute.xlu0 %803
    %v805 = vsel %vm92, %v802, 0
    %v807 = vsel %vm92, %v804, 0
    %809 = vmatpush.xpose.msra.mxu0 0.0
    %810 = vmatpush.xpose.msra.mxu0 0.0
    %811 = vmatpush.xpose.msra.mxu0 0.0
    %812 = vmatpush.xpose.msra.mxu0 0.0
    %813 = vmatpush.xpose.msra.mxu0 0.0
    %814 = vmatpush.xpose.msra.mxu0 0.0
    %815 = vmatpush.xpose.msra.mxu0 0.0
    %816 = vmatpush.xpose.msra.mxu0 0.0
    %817 = vmatpush.xpose.msra.mxu0 0.0
    %818 = vmatpush.xpose.msra.mxu0 0.0
    %819 = vmatpush.xpose.msra.mxu0 0.0
    %820 = vmatpush.xpose.msra.mxu0 0.0
    %821 = vmatpush.xpose.msra.mxu0 0.0
    %822 = vmatpush.xpose.msra.mxu0 0.0
    %823 = vmatpush.xpose.msra.mxu0 0.0
    %824 = vmatpush.xpose.msra.mxu0 %v807
    %825 = vmatmul.f32.gmra.mxu0 %v805
    %v826 = vpop.f32.mrf.mxu0
    %v827 = vadd.f32 0.0, %v826
    %828 = vdwg.mxu0
    %v829 = vmul.f32 %v827, 0.5
    %v830 = vadd.f32 %v829, %v695
    %v831 = vsel %vm120, %v830, -inf
    %832 = vmax.xlane.f32.xlu0 %v831
    %v833 = vpop.xlane.xlu0 %832
    %v834 = vsub.f32 %v830, %v833
    %v835 = vmul.f32 %v834, 1.442695
    %v836 = vpow.pop %v835
    %v837 = vsel %vm120, %v836, 0.0
    %838 = vadd.xlane.f32.xlu0 %v837
    %v839 = vpop.xlane.xlu0 %838
    %v840 = vrcp.pop %v839
    %v841 = vmul.f32 %v836, %v840
    %842 = vrot.lane.b32.xlu0 %v85, 56
    %v843 = vpop.permute.xlu0 %842
    %v846 = vsel %vm120, %v841, 0
    %848 = vmatpush.msra.mxu0 0.0
    %849 = vmatpush.msra.mxu0 0.0
    %850 = vmatpush.msra.mxu0 0.0
    %851 = vmatpush.msra.mxu0 0.0
    %852 = vmatpush.msra.mxu0 0.0
    %853 = vmatpush.msra.mxu0 0.0
    %854 = vmatpush.msra.mxu0 0.0
    %855 = vmatpush.msra.mxu0 0.0
    %856 = vmatpush.msra.mxu0 0.0
    %857 = vmatpush.msra.mxu0 0.0
    %858 = vmatpush.msra.mxu0 0.0
    %859 = vmatpush.msra.mxu0 0.0
    %860 = vmatpush.msra.mxu0 0.0
    %861 = vmatpush.msra.mxu0 0.0
    %862 = vmatpush.msra.mxu0 0.0
    %863 = vmatpush.msra.mxu0 %v843
    %864 = vmatmul.f32.gmra.mxu0 %v846
    %v865 = vpop.f32.mrf.mxu0
    %v866 = vadd.f32 0.0, %v865
    %867 = vdwg.mxu0
    %868 = vrot.lane.b32.xlu0 %v85, 116
    %v869 = vpop.permute.xlu0 %868
    %870 = vrot.lane.b32.xlu0 %v85, 84
    %v871 = vpop.permute.xlu0 %870
    %v872 = vsel %vm92, %v869, 0
    %v874 = vsel %vm92, %v871, 0
    %876 = vmatpush.xpose.msra.mxu0 0.0
    %877 = vmatpush.xpose.msra.mxu0 0.0
    %878 = vmatpush.xpose.msra.mxu0 0.0
    %879 = vmatpush.xpose.msra.mxu0 0.0
    %880 = vmatpush.xpose.msra.mxu0 0.0
    %881 = vmatpush.xpose.msra.mxu0 0.0
    %882 = vmatpush.xpose.msra.mxu0 0.0
    %883 = vmatpush.xpose.msra.mxu0 0.0
    %884 = vmatpush.xpose.msra.mxu0 0.0
    %885 = vmatpush.xpose.msra.mxu0 0.0
    %886 = vmatpush.xpose.msra.mxu0 0.0
    %887 = vmatpush.xpose.msra.mxu0 0.0
    %888 = vmatpush.xpose.msra.mxu0 0.0
    %889 = vmatpush.xpose.msra.mxu0 0.0
    %890 = vmatpush.xpose.msra.mxu0 0.0
    %891 = vmatpush.xpose.msra.mxu0 %v874
    %892 = vmatmul.f32.gmra.mxu0 %v872
    %v893 = vpop.f32.mrf.mxu0
    %v894 = vadd.f32 0.0, %v893
    %895 = vdwg.mxu0
    %v896 = vmul.f32 %v894, 0.5
    %v897 = vadd.f32 %v896, %v695
    %v898 = vsel %vm120, %v897, -inf
    %899 = vmax.xlane.f32.xlu0 %v898
    %v900 = vpop.xlane.xlu0 %899
    %v901 = vsub.f32 %v897, %v900
    %v902 = vmul.f32 %v901, 1.442695
    %v903 = vpow.pop %v902
    %v904 = vsel %vm120, %v903, 0.0
    %905 = vadd.xlane.f32.xlu0 %v904
    %v906 = vpop.xlane.xlu0 %905
    %v907 = vrcp.pop %v906
    %v908 = vmul.f32 %v903, %v907
    %909 = vrot.lane.b32.xlu0 %v85, 52
    %v910 = vpop.permute.xlu0 %909
    %v913 = vsel %vm120, %v908, 0
    %915 = vmatpush.msra.mxu0 0.0
    %916 = vmatpush.msra.mxu0 0.0
    %917 = vmatpush.msra.mxu0 0.0
    %918 = vmatpush.msra.mxu0 0.0
    %919 = vmatpush.msra.mxu0 0.0
    %920 = vmatpush.msra.mxu0 0.0
    %921 = vmatpush.msra.mxu0 0.0
    %922 = vmatpush.msra.mxu0 0.0
    %923 = vmatpush.msra.mxu0 0.0
    %924 = vmatpush.msra.mxu0 0.0
    %925 = vmatpush.msra.mxu0 0.0
    %926 = vmatpush.msra.mxu0 0.0
    %927 = vmatpush.msra.mxu0 0.0
    %928 = vmatpush.msra.mxu0 0.0
    %929 = vmatpush.msra.mxu0 0.0
    %930 = vmatpush.msra.mxu0 %v910
    %931 = vmatmul.f32.gmra.mxu0 %v913
    %v932 = vpop.f32.mrf.mxu0
    %v933 = vadd.f32 0.0, %v932
    %934 = vdwg.mxu0
    %935 = vrot.lane.b32.xlu0 %v85, 112
    %v936 = vpop.permute.xlu0 %935
    %937 = vrot.lane.b32.xlu0 %v85, 80
    %v938 = vpop.permute.xlu0 %937
    %v939 = vsel %vm92, %v936, 0
    %v941 = vsel %vm92, %v938, 0
    %943 = vmatpush.xpose.msra.mxu0 0.0
    %944 = vmatpush.xpose.msra.mxu0 0.0
    %945 = vmatpush.xpose.msra.mxu0 0.0
    %946 = vmatpush.xpose.msra.mxu0 0.0
    %947 = vmatpush.xpose.msra.mxu0 0.0
    %948 = vmatpush.xpose.msra.mxu0 0.0
    %949 = vmatpush.xpose.msra.mxu0 0.0
    %950 = vmatpush.xpose.msra.mxu0 0.0
    %951 = vmatpush.xpose.msra.mxu0 0.0
    %952 = vmatpush.xpose.msra.mxu0 0.0
    %953 = vmatpush.xpose.msra.mxu0 0.0
    %954 = vmatpush.xpose.msra.mxu0 0.0
    %955 = vmatpush.xpose.msra.mxu0 0.0
    %956 = vmatpush.xpose.msra.mxu0 0.0
    %957 = vmatpush.xpose.msra.mxu0 0.0
    %958 = vmatpush.xpose.msra.mxu0 %v941
    %959 = vmatmul.f32.gmra.mxu0 %v939
    %v960 = vpop.f32.mrf.mxu0
    %v961 = vadd.f32 0.0, %v960
    %962 = vdwg.mxu0
    %v963 = vmul.f32 %v961, 0.5
    %v964 = vadd.f32 %v963, %v695
    %v965 = vsel %vm120, %v964, -inf
    %966 = vmax.xlane.f32.xlu0 %v965
    %v967 = vpop.xlane.xlu0 %966
    %v968 = vsub.f32 %v964, %v967
    %v969 = vmul.f32 %v968, 1.442695
    %v970 = vpow.pop %v969
    %v971 = vsel %vm120, %v970, 0.0
    %972 = vadd.xlane.f32.xlu0 %v971
    %v973 = vpop.xlane.xlu0 %972
    %v974 = vrcp.pop %v973
    %v975 = vmul.f32 %v970, %v974
    %976 = vrot.lane.b32.xlu0 %v85, 48
    %v977 = vpop.permute.xlu0 %976
    %v980 = vsel %vm120, %v975, 0
    %982 = vmatpush.msra.mxu0 0.0
    %983 = vmatpush.msra.mxu0 0.0
    %984 = vmatpush.msra.mxu0 0.0
    %985 = vmatpush.msra.mxu0 0.0
    %986 = vmatpush.msra.mxu0 0.0
    %987 = vmatpush.msra.mxu0 0.0
    %988 = vmatpush.msra.mxu0 0.0
    %989 = vmatpush.msra.mxu0 0.0
    %990 = vmatpush.msra.mxu0 0.0
    %991 = vmatpush.msra.mxu0 0.0
    %992 = vmatpush.msra.mxu0 0.0
    %993 = vmatpush.msra.mxu0 0.0
    %994 = vmatpush.msra.mxu0 0.0
    %995 = vmatpush.msra.mxu0 0.0
    %996 = vmatpush.msra.mxu0 0.0
    %997 = vmatpush.msra.mxu0 %v977
    %998 = vmatmul.f32.gmra.mxu0 %v980
    %v999 = vpop.f32.mrf.mxu0
    %v1000 = vadd.f32 0.0, %v999
    %1001 = vdwg.mxu0
    %1002 = vrot.lane.b32.xlu0 %v85, 108
    %v1003 = vpop.permute.xlu0 %1002
    %1004 = vrot.lane.b32.xlu0 %v85, 76
    %v1005 = vpop.permute.xlu0 %1004
    %v1006 = vsel %vm92, %v1003, 0
    %v1008 = vsel %vm92, %v1005, 0
    %1010 = vmatpush.xpose.msra.mxu0 0.0
    %1011 = vmatpush.xpose.msra.mxu0 0.0
    %1012 = vmatpush.xpose.msra.mxu0 0.0
    %1013 = vmatpush.xpose.msra.mxu0 0.0
    %1014 = vmatpush.xpose.msra.mxu0 0.0
    %1015 = vmatpush.xpose.msra.mxu0 0.0
    %1016 = vmatpush.xpose.msra.mxu0 0.0
    %1017 = vmatpush.xpose.msra.mxu0 0.0
    %1018 = vmatpush.xpose.msra.mxu0 0.0
    %1019 = vmatpush.xpose.msra.mxu0 0.0
    %1020 = vmatpush.xpose.msra.mxu0 0.0
    %1021 = vmatpush.xpose.msra.mxu0 0.0
    %1022 = vmatpush.xpose.msra.mxu0 0.0
    %1023 = vmatpush.xpose.msra.mxu0 0.0
    %1024 = vmatpush.xpose.msra.mxu0 0.0
    %1025 = vmatpush.xpose.msra.mxu0 %v1008
    %1026 = vmatmul.f32.gmra.mxu0 %v1006
    %v1027 = vpop.f32.mrf.mxu0
    %v1028 = vadd.f32 0.0, %v1027
    %1029 = vdwg.mxu0
    %v1030 = vmul.f32 %v1028, 0.5
    %v1031 = vadd.f32 %v1030, %v695
    %v1032 = vsel %vm120, %v1031, -inf
    %1033 = vmax.xlane.f32.xlu0 %v1032
    %v1034 = vpop.xlane.xlu0 %1033
    %v1035 = vsub.f32 %v1031, %v1034
    %v1036 = vmul.f32 %v1035, 1.442695
    %v1037 = vpow.pop %v1036
    %v1038 = vsel %vm120, %v1037, 0.0
    %1039 = vadd.xlane.f32.xlu0 %v1038
    %v1040 = vpop.xlane.xlu0 %1039
    %v1041 = vrcp.pop %v1040
    %v1042 = vmul.f32 %v1037, %v1041
    %1043 = vrot.lane.b32.xlu0 %v85, 44
    %v1044 = vpop.permute.xlu0 %1043
    %v1047 = vsel %vm120, %v1042, 0
    %1049 = vmatpush.msra.mxu0 0.0
    %1050 = vmatpush.msra.mxu0 0.0
    %1051 = vmatpush.msra.mxu0 0.0
    %1052 = vmatpush.msra.mxu0 0.0
    %1053 = vmatpush.msra.mxu0 0.0
    %1054 = vmatpush.msra.mxu0 0.0
    %1055 = vmatpush.msra.mxu0 0.0
    %1056 = vmatpush.msra.mxu0 0.0
    %1057 = vmatpush.msra.mxu0 0.0
    %1058 = vmatpush.msra.mxu0 0.0
    %1059 = vmatpush.msra.mxu0 0.0
    %1060 = vmatpush.msra.mxu0 0.0
    %1061 = vmatpush.msra.mxu0 0.0
    %1062 = vmatpush.msra.mxu0 0.0
    %1063 = vmatpush.msra.mxu0 0.0
    %1064 = vmatpush.msra.mxu0 %v1044
    %1065 = vmatmul.f32.gmra.mxu0 %v1047
    %v1066 = vpop.f32.mrf.mxu0
    %v1067 = vadd.f32 0.0, %v1066
    %1068 = vdwg.mxu0
    %1069 = vrot.lane.b32.xlu0 %v85, 104
    %v1070 = vpop.permute.xlu0 %1069
    %1071 = vrot.lane.b32.xlu0 %v85, 72
    %v1072 = vpop.permute.xlu0 %1071
    %v1073 = vsel %vm92, %v1070, 0
    %v1075 = vsel %vm92, %v1072, 0
    %1077 = vmatpush.xpose.msra.mxu0 0.0
    %1078 = vmatpush.xpose.msra.mxu0 0.0
    %1079 = vmatpush.xpose.msra.mxu0 0.0
    %1080 = vmatpush.xpose.msra.mxu0 0.0
    %1081 = vmatpush.xpose.msra.mxu0 0.0
    %1082 = vmatpush.xpose.msra.mxu0 0.0
    %1083 = vmatpush.xpose.msra.mxu0 0.0
    %1084 = vmatpush.xpose.msra.mxu0 0.0
    %1085 = vmatpush.xpose.msra.mxu0 0.0
    %1086 = vmatpush.xpose.msra.mxu0 0.0
    %1087 = vmatpush.xpose.msra.mxu0 0.0
    %1088 = vmatpush.xpose.msra.mxu0 0.0
    %1089 = vmatpush.xpose.msra.mxu0 0.0
    %1090 = vmatpush.xpose.msra.mxu0 0.0
    %1091 = vmatpush.xpose.msra.mxu0 0.0
    %1092 = vmatpush.xpose.msra.mxu0 %v1075
    %1093 = vmatmul.f32.gmra.mxu0 %v1073
    %v1094 = vpop.f32.mrf.mxu0
    %v1095 = vadd.f32 0.0, %v1094
    %1096 = vdwg.mxu0
    %v1097 = vmul.f32 %v1095, 0.5
    %v1098 = vadd.f32 %v1097, %v695
    %v1099 = vsel %vm120, %v1098, -inf
    %1100 = vmax.xlane.f32.xlu0 %v1099
    %v1101 = vpop.xlane.xlu0 %1100
    %v1102 = vsub.f32 %v1098, %v1101
    %v1103 = vmul.f32 %v1102, 1.442695
    %v1104 = vpow.pop %v1103
    %v1105 = vsel %vm120, %v1104, 0.0
    %1106 = vadd.xlane.f32.xlu0 %v1105
    %v1107 = vpop.xlane.xlu0 %1106
    %v1108 = vrcp.pop %v1107
    %v1109 = vmul.f32 %v1104, %v1108
    %1110 = vrot.lane.b32.xlu0 %v85, 40
    %v1111 = vpop.permute.xlu0 %1110
    %v1114 = vsel %vm120, %v1109, 0
    %1116 = vmatpush.msra.mxu0 0.0
    %1117 = vmatpush.msra.mxu0 0.0
    %1118 = vmatpush.msra.mxu0 0.0
    %1119 = vmatpush.msra.mxu0 0.0
    %1120 = vmatpush.msra.mxu0 0.0
    %1121 = vmatpush.msra.mxu0 0.0
    %1122 = vmatpush.msra.mxu0 0.0
    %1123 = vmatpush.msra.mxu0 0.0
    %1124 = vmatpush.msra.mxu0 0.0
    %1125 = vmatpush.msra.mxu0 0.0
    %1126 = vmatpush.msra.mxu0 0.0
    %1127 = vmatpush.msra.mxu0 0.0
    %1128 = vmatpush.msra.mxu0 0.0
    %1129 = vmatpush.msra.mxu0 0.0
    %1130 = vmatpush.msra.mxu0 0.0
    %1131 = vmatpush.msra.mxu0 %v1111
    %1132 = vmatmul.f32.gmra.mxu0 %v1114
    %v1133 = vpop.f32.mrf.mxu0
    %v1134 = vadd.f32 0.0, %v1133
    %1135 = vdwg.mxu0
    %1136 = vrot.lane.b32.xlu0 %v85, 100
    %v1137 = vpop.permute.xlu0 %1136
    %1138 = vrot.lane.b32.xlu0 %v85, 68
    %v1139 = vpop.permute.xlu0 %1138
    %v1140 = vsel %vm92, %v1137, 0
    %v1142 = vsel %vm92, %v1139, 0
    %1144 = vmatpush.xpose.msra.mxu0 0.0
    %1145 = vmatpush.xpose.msra.mxu0 0.0
    %1146 = vmatpush.xpose.msra.mxu0 0.0
    %1147 = vmatpush.xpose.msra.mxu0 0.0
    %1148 = vmatpush.xpose.msra.mxu0 0.0
    %1149 = vmatpush.xpose.msra.mxu0 0.0
    %1150 = vmatpush.xpose.msra.mxu0 0.0
    %1151 = vmatpush.xpose.msra.mxu0 0.0
    %1152 = vmatpush.xpose.msra.mxu0 0.0
    %1153 = vmatpush.xpose.msra.mxu0 0.0
    %1154 = vmatpush.xpose.msra.mxu0 0.0
    %1155 = vmatpush.xpose.msra.mxu0 0.0
    %1156 = vmatpush.xpose.msra.mxu0 0.0
    %1157 = vmatpush.xpose.msra.mxu0 0.0
    %1158 = vmatpush.xpose.msra.mxu0 0.0
    %1159 = vmatpush.xpose.msra.mxu0 %v1142
    %1160 = vmatmul.f32.gmra.mxu0 %v1140
    %v1161 = vpop.f32.mrf.mxu0
    %v1162 = vadd.f32 0.0, %v1161
    %1163 = vdwg.mxu0
    %v1164 = vmul.f32 %v1162, 0.5
    %v1165 = vadd.f32 %v1164, %v695
    %v1166 = vsel %vm120, %v1165, -inf
    %1167 = vmax.xlane.f32.xlu0 %v1166
    %v1168 = vpop.xlane.xlu0 %1167
    %v1169 = vsub.f32 %v1165, %v1168
    %v1170 = vmul.f32 %v1169, 1.442695
    %v1171 = vpow.pop %v1170
    %v1172 = vsel %vm120, %v1171, 0.0
    %1173 = vadd.xlane.f32.xlu0 %v1172
    %v1174 = vpop.xlane.xlu0 %1173
    %v1175 = vrcp.pop %v1174
    %v1176 = vmul.f32 %v1171, %v1175
    %1177 = vrot.lane.b32.xlu0 %v85, 36
    %v1178 = vpop.permute.xlu0 %1177
    %v1181 = vsel %vm120, %v1176, 0
    %1183 = vmatpush.msra.mxu0 0.0
    %1184 = vmatpush.msra.mxu0 0.0
    %1185 = vmatpush.msra.mxu0 0.0
    %1186 = vmatpush.msra.mxu0 0.0
    %1187 = vmatpush.msra.mxu0 0.0
    %1188 = vmatpush.msra.mxu0 0.0
    %1189 = vmatpush.msra.mxu0 0.0
    %1190 = vmatpush.msra.mxu0 0.0
    %1191 = vmatpush.msra.mxu0 0.0
    %1192 = vmatpush.msra.mxu0 0.0
    %1193 = vmatpush.msra.mxu0 0.0
    %1194 = vmatpush.msra.mxu0 0.0
    %1195 = vmatpush.msra.mxu0 0.0
    %1196 = vmatpush.msra.mxu0 0.0
    %1197 = vmatpush.msra.mxu0 0.0
    %1198 = vmatpush.msra.mxu0 %v1178
    %1199 = vmatmul.f32.gmra.mxu0 %v1181
    %v1200 = vpop.f32.mrf.mxu0
    %v1201 = vadd.f32 0.0, %v1200
    %1202 = vdwg.mxu0
    %1204 = vrot.lane.b32.xlu0 %v799, 4
    %v1205 = vpop.permute.xlu0 %1204
    %1208 = vrot.lane.b32.xlu0 %v866, 8
    %v1209 = vpop.permute.xlu0 %1208
    %1212 = vrot.lane.b32.xlu0 %v933, 12
    %v1213 = vpop.permute.xlu0 %1212
    %1216 = vrot.lane.b32.xlu0 %v1000, 16
    %v1217 = vpop.permute.xlu0 %1216
    %1220 = vrot.lane.b32.xlu0 %v1067, 20
    %v1221 = vpop.permute.xlu0 %1220
    %1224 = vrot.lane.b32.xlu0 %v1134, 24
    %v1225 = vpop.permute.xlu0 %1224
    %1228 = vrot.lane.b32.xlu0 %v1201, 28
    %v1229 = vpop.permute.xlu0 %1228
    %v1231 = vsel %vm92, %v732, %v1205
    %v1232 = vsel %vm120, %v1231, %v1209
    %v1233 = vsel %vm657, %v1232, %v1213
    %v1234 = vsel %vm659, %v1233, %v1217
    %v1235 = vsel %vm661, %v1234, %v1221
    %v1236 = vsel %vm663, %v1235, %v1225
    %v1237 = vsel %vm665, %v1236, %v1229
    %v1238 = vld [vmem:[%s4] sm:$0xff]
    %v1239 = vld [vmem:[%s4 + $0x8] sm:$0xff]
    %v1240 = vld [vmem:[%s4 + $0x10] sm:$0xff]
    %v1241 = vld [vmem:[%s4 + $0x18] sm:$0xff]
    %v1242 = vperm.slane %v48, 0
    %v1244 = vsel %vm57, %v666, 0
    %v1247 = vsel %vm57, %v1237, 0
    %1249 = vmatpush.msra.mxu0 0.0
    %1250 = vmatpush.msra.mxu0 0.0
    %1251 = vmatpush.msra.mxu0 0.0
    %1252 = vmatpush.msra.mxu0 0.0
    %1253 = vmatpush.msra.mxu0 0.0
    %1254 = vmatpush.msra.mxu0 0.0
    %1255 = vmatpush.msra.mxu0 0.0
    %1256 = vmatpush.msra.mxu0 0.0
    %1257 = vmatpush.msra.mxu0 0.0
    %1258 = vmatpush.msra.mxu0 0.0
    %1259 = vmatpush.msra.mxu0 0.0
    %1260 = vmatpush.msra.mxu0 0.0
    %1261 = vmatpush.msra.mxu0 %v1241
    %1262 = vmatpush.msra.mxu0 %v1240
    %1263 = vmatpush.msra.mxu0 %v1239
    %1264 = vmatpush.msra.mxu0 %v1238
    %1265 = vmatmul.f32.gmra.mxu0 %v1244
    %v1266 = vpop.f32.mrf.mxu0
    %v1267 = vadd.f32 %v1242, %v1266
    %1268 = vmatmul.f32.gmra.mxu0 %v1247
    %v1269 = vpop.f32.mrf.mxu0
    %v1270 = vadd.f32 %v1242, %v1269
    %1271 = vdwg.mxu0
    %v1272 = vadd.f32 %v45, %v1267
    %v1273 = vadd.f32 %v46, %v1270
    %v1274 = vsel %vm57, %v1272, 0.0
    %1275 = vadd.xlane.f32.xlu0 %v1274
    %v1276 = vpop.xlane.xlu0 %1275
    %v1277 = vsel %vm57, %v1273, 0.0
    %1278 = vadd.xlane.f32.xlu0 %v1277
    %v1279 = vpop.xlane.xlu0 %1278
    %v1280 = vrcp.pop 32.0
    %v1281 = vmul.f32 32.0, %v1280
    %v1282 = vsub.f32 1.0, %v1281
    %v1283 = vmul.f32 %v1280, %v1282
    %v1284 = vadd.f32 %v1280, %v1283
    %vm1285 = vweird.f32 %v1280
    %v1286 = vsel %vm1285, %v1280, %v1284
    %v1287 = vmul.f32 %v1276, %v1286
    %v1288 = vmul.f32 %v1279, %v1286
    %v1289 = vsub.f32 %v1272, %v1287
    %v1290 = vsub.f32 %v1273, %v1288
    %v1291 = vmul.f32 %v1289, %v1289
    %v1292 = vmul.f32 %v1290, %v1290
    %v1293 = vsel %vm57, %v1291, 0.0
    %1294 = vadd.xlane.f32.xlu0 %v1293
    %v1295 = vpop.xlane.xlu0 %1294
    %v1296 = vsel %vm57, %v1292, 0.0
    %1297 = vadd.xlane.f32.xlu0 %v1296
    %v1298 = vpop.xlane.xlu0 %1297
    %v1299 = vmul.f32 %v1295, 0.032258064
    %v1300 = vmul.f32 %v1298, 0.032258064
    %v1301 = vrsqrt.pop %v1299
    %v1302 = vmul.f32 %v1301, %v1299
    %v1303 = vmul.f32 %v1302, %v1301
    %v1304 = vmul.f32 0.5, %v1303
    %v1305 = vsub.f32 1.5, %v1304
    %v1306 = vmul.f32 %v1301, %v1305
    %v1307 = vmul.f32 %v1299, %v1306
    %vm1308 = vcmp.eq.f32.partialorder %v1299, inf
    %v1309 = vsel %vm1308, %v1299, %v1307
    %vm1310 = vcmp.eq.f32.partialorder %v1299, 0.0
    %v1311 = vand.u32 %v1299, 2147483648
    %v1312 = vsel %vm1310, %v1311, %v1309
    %v1313 = vrsqrt.pop %v1300
    %v1314 = vmul.f32 %v1313, %v1300
    %v1315 = vmul.f32 %v1314, %v1313
    %v1316 = vmul.f32 0.5, %v1315
    %v1317 = vsub.f32 1.5, %v1316
    %v1318 = vmul.f32 %v1313, %v1317
    %v1319 = vmul.f32 %v1300, %v1318
    %vm1320 = vcmp.eq.f32.partialorder %v1300, inf
    %v1321 = vsel %vm1320, %v1300, %v1319
    %vm1322 = vcmp.eq.f32.partialorder %v1300, 0.0
    %v1323 = vand.u32 %v1300, 2147483648
    %v1324 = vsel %vm1322, %v1323, %v1321
    %v1325 = vadd.f32 %v1312, 1e-06
    %v1326 = vadd.f32 %v1324, 1e-06
    %v1327 = vrcp.pop %v1325
    %v1328 = vrcp.pop %v1326
    %v1329 = vperm.slane %v48, 1
    %v1330 = vmul.f32 %v1329, %v1289
    %v1331 = vmul.f32 %v1329, %v1290
    %v1332 = vmul.f32 %v1330, %v1327
    %v1333 = vmul.f32 %v1331, %v1328
    %v1334 = vperm.slane %v48, 2
    %v1335 = vadd.f32 %v1332, %v1334
    %v1336 = vadd.f32 %v1333, %v1334
    %v1337 = vld [vmem:[%s6] sm:$0xff]
    %v1338 = vld [vmem:[%s6 + $0x8] sm:$0xff]
    %v1339 = vld [vmem:[%s6 + $0x10] sm:$0xff]
    %v1340 = vld [vmem:[%s6 + $0x18] sm:$0xff]
    %v1341 = vld [vmem:[%s7] sm:$0x1]
    %v1343 = vperm.slane %v1341, 0
    %v1346 = vsel %vm57, %v1335, 0
    %v1349 = vsel %vm57, %v1336, 0
    %1351 = vmatpush.msra.mxu0 0.0
    %1352 = vmatpush.msra.mxu0 0.0
    %1353 = vmatpush.msra.mxu0 0.0
    %1354 = vmatpush.msra.mxu0 0.0
    %1355 = vmatpush.msra.mxu0 0.0
    %1356 = vmatpush.msra.mxu0 0.0
    %1357 = vmatpush.msra.mxu0 0.0
    %1358 = vmatpush.msra.mxu0 0.0
    %1359 = vmatpush.msra.mxu0 0.0
    %1360 = vmatpush.msra.mxu0 0.0
    %1361 = vmatpush.msra.mxu0 0.0
    %1362 = vmatpush.msra.mxu0 0.0
    %1363 = vmatpush.msra.mxu0 %v1340
    %1364 = vmatpush.msra.mxu0 %v1339
    %1365 = vmatpush.msra.mxu0 %v1338
    %1366 = vmatpush.msra.mxu0 %v1337
    %1367 = vmatmul.f32.gmra.mxu0 %v1346
    %v1368 = vpop.f32.mrf.mxu0
    %v1369 = vadd.f32 %v1343, %v1368
    %1370 = vmatmul.f32.gmra.mxu0 %v1349
    %v1371 = vpop.f32.mrf.mxu0
    %v1372 = vadd.f32 %v1343, %v1371
    %1373 = vdwg.mxu0
    %v1374 = vmax.f32 %v1369, 0.0
    %v1375 = vmax.f32 %v1372, 0.0
    %v1376 = vld [vmem:[%s8] sm:$0xff]
    %v1377 = vld [vmem:[%s8 + $0x8] sm:$0xff]
    %v1378 = vld [vmem:[%s8 + $0x10] sm:$0xff]
    %v1379 = vld [vmem:[%s8 + $0x18] sm:$0xff]
    %v1380 = vld [vmem:[%s8 + $0x20] sm:$0xff]
    %v1381 = vld [vmem:[%s8 + $0x28] sm:$0xff]
    %v1382 = vld [vmem:[%s8 + $0x30] sm:$0xff]
    %v1383 = vld [vmem:[%s8 + $0x38] sm:$0xff]
    %v1384 = vperm.slane %v48, 3
    %vm1385 = vcmask 523264
    %v1387 = vsel %vm1385, %v1374, 0
    %v1390 = vsel %vm1385, %v1375, 0
    %1392 = vmatpush.msra.mxu0 0.0
    %1393 = vmatpush.msra.mxu0 0.0
    %1394 = vmatpush.msra.mxu0 0.0
    %1395 = vmatpush.msra.mxu0 0.0
    %1396 = vmatpush.msra.mxu0 0.0
    %1397 = vmatpush.msra.mxu0 0.0
    %1398 = vmatpush.msra.mxu0 0.0
    %1399 = vmatpush.msra.mxu0 0.0
    %1400 = vmatpush.msra.mxu0 %v1383
    %1401 = vmatpush.msra.mxu0 %v1382
    %1402 = vmatpush.msra.mxu0 %v1381
    %1403 = vmatpush.msra.mxu0 %v1380
    %1404 = vmatpush.msra.mxu0 %v1379
    %1405 = vmatpush.msra.mxu0 %v1378
    %1406 = vmatpush.msra.mxu0 %v1377
    %1407 = vmatpush.msra.mxu0 %v1376
    %1408 = vmatmul.f32.gmra.mxu0 %v1387
    %v1409 = vpop.f32.mrf.mxu0
    %v1410 = vadd.f32 %v1384, %v1409
    %1411 = vmatmul.f32.gmra.mxu0 %v1390
    %v1412 = vpop.f32.mrf.mxu0
    %v1413 = vadd.f32 %v1384, %v1412
    %1414 = vdwg.mxu0
    %v1415 = vadd.f32 %v1335, %v1410
    %v1416 = vadd.f32 %v1336, %v1413
    %v1417 = vsel %vm57, %v1415, 0.0
    %1418 = vadd.xlane.f32.xlu0 %v1417
    %v1419 = vpop.xlane.xlu0 %1418
    %v1420 = vsel %vm57, %v1416, 0.0
    %1421 = vadd.xlane.f32.xlu0 %v1420
    %v1422 = vpop.xlane.xlu0 %1421
    %v1423 = vmul.f32 %v1419, %v1286
    %v1424 = vmul.f32 %v1422, %v1286
    %v1425 = vsub.f32 %v1415, %v1423
    %v1426 = vsub.f32 %v1416, %v1424
    %v1427 = vmul.f32 %v1425, %v1425
    %v1428 = vmul.f32 %v1426, %v1426
    %v1429 = vsel %vm57, %v1427, 0.0
    %1430 = vadd.xlane.f32.xlu0 %v1429
    %v1431 = vpop.xlane.xlu0 %1430
    %v1432 = vsel %vm57, %v1428, 0.0
    %1433 = vadd.xlane.f32.xlu0 %v1432
    %v1434 = vpop.xlane.xlu0 %1433
    %v1435 = vmul.f32 %v1431, 0.032258064
    %v1436 = vmul.f32 %v1434, 0.032258064
    %v1437 = vrsqrt.pop %v1435
    %v1438 = vmul.f32 %v1437, %v1435
    %v1439 = vmul.f32 %v1438, %v1437
    %v1440 = vmul.f32 0.5, %v1439
    %v1441 = vsub.f32 1.5, %v1440
    %v1442 = vmul.f32 %v1437, %v1441
    %v1443 = vmul.f32 %v1435, %v1442
    %vm1444 = vcmp.eq.f32.partialorder %v1435, inf
    %v1445 = vsel %vm1444, %v1435, %v1443
    %vm1446 = vcmp.eq.f32.partialorder %v1435, 0.0
    %v1447 = vand.u32 %v1435, 2147483648
    %v1448 = vsel %vm1446, %v1447, %v1445
    %v1449 = vrsqrt.pop %v1436
    %v1450 = vmul.f32 %v1449, %v1436
    %v1451 = vmul.f32 %v1450, %v1449
    %v1452 = vmul.f32 0.5, %v1451
    %v1453 = vsub.f32 1.5, %v1452
    %v1454 = vmul.f32 %v1449, %v1453
    %v1455 = vmul.f32 %v1436, %v1454
    %vm1456 = vcmp.eq.f32.partialorder %v1436, inf
    %v1457 = vsel %vm1456, %v1436, %v1455
    %vm1458 = vcmp.eq.f32.partialorder %v1436, 0.0
    %v1459 = vand.u32 %v1436, 2147483648
    %v1460 = vsel %vm1458, %v1459, %v1457
    %v1461 = vadd.f32 %v1448, 1e-06
    %v1462 = vadd.f32 %v1460, 1e-06
    %v1463 = vrcp.pop %v1461
    %v1464 = vrcp.pop %v1462
    %v1465 = vperm.slane %v48, 4
    %v1466 = vmul.f32 %v1465, %v1425
    %v1467 = vmul.f32 %v1465, %v1426
    %v1468 = vmul.f32 %v1466, %v1463
    %v1469 = vmul.f32 %v1467, %v1464
    %v1470 = vperm.slane %v48, 5
    %v1471 = vadd.f32 %v1468, %v1470
    %v1472 = vadd.f32 %v1469, %v1470
    %v1473 = vsel %vm57, %v1471, 0.0
    %v1474 = vrot.slane %v1473, 4
    %v1475 = vadd.f32 %v1473, %v1474
    %v1476 = vrot.slane %v1475, 2
    %v1477 = vadd.f32 %v1475, %v1476
    %v1478 = vrot.slane %v1477, 1
    %v1479 = vadd.f32 %v1477, %v1478
    %v1480 = vrcp.pop 8.0
    %v1481 = vmul.f32 8.0, %v1480
    %v1482 = vsub.f32 1.0, %v1481
    %v1483 = vmul.f32 %v1480, %v1482
    %v1484 = vadd.f32 %v1480, %v1483
    %vm1485 = vweird.f32 %v1480
    %v1486 = vsel %vm1485, %v1480, %v1484
    %v1487 = vmul.f32 %v1479, %v1486
    %v1488 = vsel %vm57, %v1472, 0.0
    %v1489 = vrot.slane %v1488, 4
    %v1490 = vadd.f32 %v1488, %v1489
    %v1491 = vrot.slane %v1490, 2
    %v1492 = vadd.f32 %v1490, %v1491
    %v1493 = vrot.slane %v1492, 1
    %v1494 = vadd.f32 %v1492, %v1493
    %v1495 = vmul.f32 %v1494, %v1486
    %vm1496 = vcmask 1040384
    %v1497 = vsel %vm1496, %v1487, %v1495
    %v1498 = vld [vmem:[%s9] sm:$0xff]
    %v1499 = vld [vmem:[%s9 + $0x8] sm:$0xff]
    %v1500 = vld [vmem:[%s9 + $0x10] sm:$0xff]
    %v1501 = vld [vmem:[%s9 + $0x18] sm:$0xff]
    %v1502 = vld [vmem:[%s9 + $0x20] sm:$0xff]
    %v1503 = vld [vmem:[%s9 + $0x28] sm:$0xff]
    %v1504 = vld [vmem:[%s9 + $0x30] sm:$0xff]
    %v1505 = vld [vmem:[%s9 + $0x38] sm:$0xff]
    %v1506 = vld [vmem:[%s10] sm:$0x3]
    %v1508 = vperm.slane %v1506, 0
    %v1509 = vperm.slane %v1506, 1
    %v1513 = vsel %vm57, %v1497, 0
    %1515 = vmatpush.msra.mxu0 0.0
    %1516 = vmatpush.msra.mxu0 0.0
    %1517 = vmatpush.msra.mxu0 0.0
    %1518 = vmatpush.msra.mxu0 0.0
    %1519 = vmatpush.msra.mxu0 0.0
    %1520 = vmatpush.msra.mxu0 0.0
    %1521 = vmatpush.msra.mxu0 0.0
    %1522 = vmatpush.msra.mxu0 0.0
    %1523 = vmatpush.msra.mxu0 0.0
    %1524 = vmatpush.msra.mxu0 0.0
    %1525 = vmatpush.msra.mxu0 0.0
    %1526 = vmatpush.msra.mxu0 0.0
    %1527 = vmatpush.msra.mxu0 %v1504
    %1528 = vmatpush.msra.mxu0 %v1502
    %1529 = vmatpush.msra.mxu0 %v1500
    %1530 = vmatpush.msra.mxu0 %v1498
    %1531 = vmatmul.f32.gmra.mxu0 %v1513
    %v1532 = vpop.f32.mrf.mxu0
    %v1533 = vadd.f32 %v1508, %v1532
    %1534 = vdwg.mxu0
    %1535 = vmatpush.msra.mxu0 0.0
    %1536 = vmatpush.msra.mxu0 0.0
    %1537 = vmatpush.msra.mxu0 0.0
    %1538 = vmatpush.msra.mxu0 0.0
    %1539 = vmatpush.msra.mxu0 0.0
    %1540 = vmatpush.msra.mxu0 0.0
    %1541 = vmatpush.msra.mxu0 0.0
    %1542 = vmatpush.msra.mxu0 0.0
    %1543 = vmatpush.msra.mxu0 0.0
    %1544 = vmatpush.msra.mxu0 0.0
    %1545 = vmatpush.msra.mxu0 0.0
    %1546 = vmatpush.msra.mxu0 0.0
    %1547 = vmatpush.msra.mxu0 %v1505
    %1548 = vmatpush.msra.mxu0 %v1503
    %1549 = vmatpush.msra.mxu0 %v1501
    %1550 = vmatpush.msra.mxu0 %v1499
    %1551 = vmatmul.f32.gmra.mxu0 %v1513
    %v1552 = vpop.f32.mrf.mxu0
    %v1553 = vadd.f32 %v1509, %v1552
    %1554 = vdwg.mxu0
    %v1555 = vld [vmem:[%s11] sm:$0xff]
    %v1556 = vld [vmem:[%s11 + $0x8] sm:$0xff]
    %v1557 = vld [vmem:[%s11 + $0x10] sm:$0xff]
    %v1558 = vld [vmem:[%s11 + $0x18] sm:$0xff]
    %v1559 = vld [vmem:[%s11 + $0x20] sm:$0xff]
    %v1560 = vld [vmem:[%s11 + $0x28] sm:$0xff]
    %v1561 = vld [vmem:[%s11 + $0x30] sm:$0xff]
    %v1562 = vld [vmem:[%s11 + $0x38] sm:$0xff]
    %v1563 = vld [vmem:[%s11 + $0x40] sm:$0xff]
    %v1564 = vld [vmem:[%s11 + $0x48] sm:$0xff]
    %v1565 = vld [vmem:[%s11 + $0x50] sm:$0xff]
    %v1566 = vld [vmem:[%s11 + $0x58] sm:$0xff]
    %v1567 = vld [vmem:[%s11 + $0x60] sm:$0xff]
    %v1568 = vld [vmem:[%s11 + $0x68] sm:$0xff]
    %v1569 = vld [vmem:[%s11 + $0x70] sm:$0xff]
    %v1570 = vld [vmem:[%s11 + $0x78] sm:$0xff]
    %v1571 = vld [vmem:[%s11 + $0x80] sm:$0xff]
    %v1572 = vld [vmem:[%s11 + $0x88] sm:$0xff]
    %v1573 = vld [vmem:[%s11 + $0x90] sm:$0xff]
    %v1574 = vld [vmem:[%s11 + $0x98] sm:$0xff]
    %v1575 = vld [vmem:[%s11 + $0xa0] sm:$0xff]
    %v1576 = vld [vmem:[%s11 + $0xa8] sm:$0xff]
    %v1577 = vld [vmem:[%s11 + $0xb0] sm:$0xff]
    %v1578 = vld [vmem:[%s11 + $0xb8] sm:$0xff]
    %v1579 = vld [vmem:[%s11 + $0xc0] sm:$0xff]
    %v1580 = vld [vmem:[%s11 + $0xc8] sm:$0xff]
    %v1581 = vld [vmem:[%s11 + $0xd0] sm:$0xff]
    %v1582 = vld [vmem:[%s11 + $0xd8] sm:$0xff]
    %v1583 = vld [vmem:[%s11 + $0xe0] sm:$0xff]
    %v1584 = vld [vmem:[%s11 + $0xe8] sm:$0xff]
    %v1585 = vld [vmem:[%s11 + $0xf0] sm:$0xff]
    %v1586 = vld [vmem:[%s11 + $0xf8] sm:$0xff]
    %v1587 = vld [vmem:[%s12] sm:$0x1]
    %v1589 = vperm.slane %v1587, 0
    %1591 = vmatpush.msra.mxu0 %v1570
    %1592 = vmatpush.msra.mxu0 %v1569
    %1593 = vmatpush.msra.mxu0 %v1568
    %1594 = vmatpush.msra.mxu0 %v1567
    %1595 = vmatpush.msra.mxu0 %v1566
    %1596 = vmatpush.msra.mxu0 %v1565
    %1597 = vmatpush.msra.mxu0 %v1564
    %1598 = vmatpush.msra.mxu0 %v1563
    %1599 = vmatpush.msra.mxu0 %v1562
    %1600 = vmatpush.msra.mxu0 %v1561
    %1601 = vmatpush.msra.mxu0 %v1560
    %1602 = vmatpush.msra.mxu0 %v1559
    %1603 = vmatpush.msra.mxu0 %v1558
    %1604 = vmatpush.msra.mxu0 %v1557
    %1605 = vmatpush.msra.mxu0 %v1556
    %1606 = vmatpush.msra.mxu0 %v1555
    %1607 = vmatmul.f32.gmra.mxu0 %v1533
    %v1608 = vpop.f32.mrf.mxu0
    %v1609 = vadd.f32 %v1589, %v1608
    %1610 = vdwg.mxu0
    %1611 = vmatpush.msra.mxu0 %v1586
    %1612 = vmatpush.msra.mxu0 %v1585
    %1613 = vmatpush.msra.mxu0 %v1584
    %1614 = vmatpush.msra.mxu0 %v1583
    %1615 = vmatpush.msra.mxu0 %v1582
    %1616 = vmatpush.msra.mxu0 %v1581
    %1617 = vmatpush.msra.mxu0 %v1580
    %1618 = vmatpush.msra.mxu0 %v1579
    %1619 = vmatpush.msra.mxu0 %v1578
    %1620 = vmatpush.msra.mxu0 %v1577
    %1621 = vmatpush.msra.mxu0 %v1576
    %1622 = vmatpush.msra.mxu0 %v1575
    %1623 = vmatpush.msra.mxu0 %v1574
    %1624 = vmatpush.msra.mxu0 %v1573
    %1625 = vmatpush.msra.mxu0 %v1572
    %1626 = vmatpush.msra.mxu0 %v1571
    %1627 = vmatmul.f32.gmra.mxu0 %v1553
    %v1628 = vpop.f32.mrf.mxu0
    %v1629 = vadd.f32 %v1609, %v1628
    %1630 = vdwg.mxu0
    %vm1631 = vcmask 25600
    %1632 = vst.msk [vmem:[#allocation2] sm:$0x3] %vm1631, %v1629
    // Predicated region
    $region54: #{tpu_custom_call.1} parent=1 // pred_check
      _
    $region55: #{tpu_custom_call.1} parent=1 // pred_check_branch
      %1634 = sbr.rel (0) target = $region57
    $region56: #{tpu_custom_call.1} parent=1 // pred_region
      %1636 = vsyncadd [#allocation3], 0
      %s1638 = sshll.u32 [#allocation2], 4
      %s1639 = int_to_ptr.vmem [resolvable:$true] %s1638
      %s1640 = sshll.u32 %s13, 4
      %s1641 = int_to_ptr.hbm [resolvable:$true] %s1640
      %1643 = dma.vmem_to_hbm [thread:$0]  %s1639, 32, %s1641, [#allocation3]
    $region57: #{tpu_custom_call.1} parent=1 // pred_fallthru
      _
    // Predicated region
    $region58: #{tpu_custom_call.1} parent=1 // pred_check
      _
    $region59: #{tpu_custom_call.1} parent=1 // pred_check_branch
      %1645 = sbr.rel (0) target = $region61
    $region60: #{tpu_custom_call.1} parent=1 // pred_region
      %1647 = dma.done [#allocation3], 32
    $region61: #{tpu_custom_call.1} parent=1 // pred_fallthru
      _
    %1648 = vsyncpa [#allocation3], 1

</llo_original>
